<compile_context>
chip_gen: v7x
topology: tpu7x:2x2x1
jax: 0.10.0
libtpu: 0.0.40
codegen_flags: <defaults>
</compile_context>

<pallas_src>
import functools
import math

import jax
import jax.numpy as jnp
from jax.experimental import pallas as pl
from jax.experimental.pallas import tpu as pltpu

N_STATE = 32
N_HEAD = 4
N_CTX = 8
BATCH = 2
N_MLP = N_STATE * 4
HEAD_DIM = N_STATE // N_HEAD
LN_EPS = 1e-5


def _round_up(n, m):
    return ((n + m - 1) // m) * m


def _layernorm(x, gamma, beta):
    mu = jnp.mean(x, axis=-1, keepdims=True)
    var = jnp.mean((x - mu) ** 2, axis=-1, keepdims=True)
    return (x - mu) * jax.lax.rsqrt(var + LN_EPS) * gamma + beta


def residual_block_kernel(
    x_ref,       # (T, C)            one batch element (batch dim squeezed by BlockSpec)
    wqkv_ref,    # (C, 3C)           [q*scale | k | v] columns, head-major within each
    wo_ref,      # (C, C)
    w1_ref,      # (C, 4C)
    w2_ref,      # (4C, C)
    vecs_ref,    # (8, VW)           packed gains/biases (one vreg at toy size)
    o_ref,       # (T, C)
    *,
    n_head,
):
    x = x_ref[...]                                   # f32
    t, c = x.shape
    hd = c // n_head
    n_mlp = w1_ref.shape[1]

    vecs = vecs_ref[...]
    ln1_g = vecs[0:1, :c]
    ln1_b = vecs[1:2, :c]
    bqkv = vecs[2:3, :3 * c]                         # [bq*scale | 0 (no key bias) | bv]
    bo = vecs[3:4, :c]
    ln2_g = vecs[4:5, :c]
    ln2_b = vecs[5:6, :c]
    b1 = vecs[6:7, :n_mlp]
    b2 = vecs[7:8, :c]

    # ---------------- self-attention branch ----------------
    xn = _layernorm(x, ln1_g, ln1_b)

    # Single lane-dense QKV matmul; q columns were pre-scaled by hd**-0.5 at init.
    qkv = jnp.dot(xn, wqkv_ref[...], preferred_element_type=jnp.float32) + bqkv  # (T, 3C)

    wv_heads = []
    for h in range(n_head):                          # static unroll over heads
        qh = qkv[:, h * hd:(h + 1) * hd]             # (T, hd)
        kh = qkv[:, c + h * hd:c + (h + 1) * hd]
        vh = qkv[:, 2 * c + h * hd:2 * c + (h + 1) * hd]
        s = jnp.einsum("qd,kd->qk", qh, kh,
                       preferred_element_type=jnp.float32)        # (T, T)
        s = s - jnp.max(s, axis=-1, keepdims=True)
        e = jnp.exp(s)                                            # f32 softmax
        p = e / jnp.sum(e, axis=-1, keepdims=True)                # exact divide
        wv_heads.append(jnp.dot(p, vh, preferred_element_type=jnp.float32))
    wv = jnp.concatenate(wv_heads, axis=-1)          # (T, C), head-major lanes

    # Output projection with the head-sum fused in (single matmul, K = H*hd).
    attn_out = jnp.dot(wv, wo_ref[...], preferred_element_type=jnp.float32) + bo
    x = x + attn_out

    # ---------------- MLP branch ----------------
    xn2 = _layernorm(x, ln2_g, ln2_b)
    h1 = jnp.dot(xn2, w1_ref[...], preferred_element_type=jnp.float32) + b1
    # Exact GELU (nn.GELU default). TODO(synk): at real Whisper sizes switch to the
    # tanh approximation (EUP slot) if bit-exactness is not required.
    h1 = 0.5 * h1 * (1.0 + jax.lax.erf(h1 * (1.0 / math.sqrt(2.0))))
    h2 = jnp.dot(h1, w2_ref[...], preferred_element_type=jnp.float32) + b2

    o_ref[...] = (x + h2).astype(o_ref.dtype)


def pack_params(p, n_head=N_HEAD):
    """One-time (init-time) packing: do NOT call per forward step."""
    n_state = p["wq"].shape[0]
    n_mlp = p["w1"].shape[1]
    hd = n_state // n_head
    scale = float(hd) ** -0.5

    # Fused (C, 3C) QKV weight; attention scale folded into the q columns.
    wqkv = jnp.concatenate([p["wq"] * scale, p["wk"], p["wv"]], axis=1)

    # All tiny gain/bias vectors packed into one (8, VW) slab (VW = 128 at toy size).
    vw = max(128, _round_up(n_mlp, 128), _round_up(3 * n_state, 128))
    vecs = jnp.zeros((8, vw), jnp.float32)
    vecs = vecs.at[0, :n_state].set(p["ln1_g"][0])
    vecs = vecs.at[1, :n_state].set(p["ln1_b"][0])
    vecs = vecs.at[2, :n_state].set(p["bq"][0] * scale)        # key bias stays zero
    vecs = vecs.at[2, 2 * n_state:3 * n_state].set(p["bv"][0])
    vecs = vecs.at[3, :n_state].set(p["bo"][0])
    vecs = vecs.at[4, :n_state].set(p["ln2_g"][0])
    vecs = vecs.at[5, :n_state].set(p["ln2_b"][0])
    vecs = vecs.at[6, :n_mlp].set(p["b1"][0])
    vecs = vecs.at[7, :n_state].set(p["b2"][0])

    return {"wqkv": wqkv, "wo": p["wo"], "w1": p["w1"], "w2": p["w2"], "vecs": vecs}


def residual_attention_block(x, packed, n_head=N_HEAD):
    b, n_ctx, n_state = x.shape
    n_mlp = packed["w1"].shape[1]
    vw = packed["vecs"].shape[1]

    kernel = functools.partial(residual_block_kernel, n_head=n_head)

    # One grid step per batch element (marked "parallel": uses both v7x TensorCores;
    # harmless on v5e/v6e). Weights/vecs keep a constant block index -> no re-DMA.
    # TODO(synk): at real Whisper sizes (n_state>=1024, n_ctx=1500) add grid axes
    # tiling n_ctx and n_mlp, cast matmul operands to bf16 (keep LN/softmax stats
    # f32), present a lane-dense output (n_state stays on lanes), and size tiles
    # for 64 MiB VMEM on v7x / raise vmem_limit_bytes on v6e.
    out = pl.pallas_call(
        kernel,
        out_shape=jax.ShapeDtypeStruct((b, n_ctx, n_state), x.dtype),
        grid_spec=pltpu.PrefetchScalarGridSpec(
            num_scalar_prefetch=0,
            grid=(b,),
            in_specs=[
                pl.BlockSpec((None, n_ctx, n_state), lambda i: (i, 0, 0)),
                pl.BlockSpec((n_state, 3 * n_state), lambda i: (0, 0)),
                pl.BlockSpec((n_state, n_state), lambda i: (0, 0)),
                pl.BlockSpec((n_state, n_mlp), lambda i: (0, 0)),
                pl.BlockSpec((n_mlp, n_state), lambda i: (0, 0)),
                pl.BlockSpec((8, vw), lambda i: (0, 0)),
            ],
            out_specs=pl.BlockSpec((None, n_ctx, n_state), lambda i: (i, 0, 0)),
        ),
        compiler_params=pltpu.CompilerParams(dimension_semantics=("parallel",)),
    )(x, packed["wqkv"], packed["wo"], packed["w1"], packed["w2"], packed["vecs"])
    return out


def make_params(key, n_state=N_STATE, n_mlp=N_MLP):
    ks = jax.random.split(key, 8)
    s = 0.02
    # Linear weights stored pre-transposed to (in, out) so the kernel does x @ W.
    return {
        "ln1_g": jnp.ones((1, n_state), jnp.float32),
        "ln1_b": jnp.zeros((1, n_state), jnp.float32),
        "wq": s * jax.random.normal(ks[0], (n_state, n_state), jnp.float32),
        "bq": s * jax.random.normal(ks[1], (1, n_state), jnp.float32),
        "wk": s * jax.random.normal(ks[2], (n_state, n_state), jnp.float32),
        "wv": s * jax.random.normal(ks[3], (n_state, n_state), jnp.float32),
        "bv": jnp.zeros((1, n_state), jnp.float32),
        "wo": s * jax.random.normal(ks[4], (n_state, n_state), jnp.float32),
        "bo": jnp.zeros((1, n_state), jnp.float32),
        "ln2_g": jnp.ones((1, n_state), jnp.float32),
        "ln2_b": jnp.zeros((1, n_state), jnp.float32),
        "w1": s * jax.random.normal(ks[5], (n_state, n_mlp), jnp.float32),
        "b1": s * jax.random.normal(ks[6], (1, n_mlp), jnp.float32),
        "w2": s * jax.random.normal(ks[7], (n_mlp, n_state), jnp.float32),
        "b2": jnp.zeros((1, n_state), jnp.float32),
    }


def reference_jax(x, p, n_head=N_HEAD):
    """Pure-JAX reference mirroring the PyTorch forward (cross_attention=False, mask=None)."""
    def ln(v, g, b_):
        mu = jnp.mean(v, -1, keepdims=True)
        var = jnp.mean((v - mu) ** 2, -1, keepdims=True)
        return (v - mu) / jnp.sqrt(var + LN_EPS) * g + b_

    bsz, n_ctx, n_state = x.shape
    hd = n_state // n_head
    scale = float(hd) ** (-0.25)

    xn = ln(x, p["ln1_g"][0], p["ln1_b"][0])
    q = xn @ p["wq"] + p["bq"][0]
    k = xn @ p["wk"]
    v = xn @ p["wv"] + p["bv"][0]
    q = q.reshape(bsz, n_ctx, n_head, hd).transpose(0, 2, 1, 3) * scale
    k = k.reshape(bsz, n_ctx, n_head, hd).transpose(0, 2, 3, 1) * scale
    v = v.reshape(bsz, n_ctx, n_head, hd).transpose(0, 2, 1, 3)
    qk = q @ k
    w = jax.nn.softmax(qk, axis=-1)
    wv = (w @ v).transpose(0, 2, 1, 3).reshape(bsz, n_ctx, n_state)
    x = x + (wv @ p["wo"] + p["bo"][0])

    xn2 = ln(x, p["ln2_g"][0], p["ln2_b"][0])
    h1 = xn2 @ p["w1"] + p["b1"][0]
    h1 = 0.5 * h1 * (1.0 + jax.lax.erf(h1 / math.sqrt(2.0)))
    return x + (h1 @ p["w2"] + p["b2"][0])


if __name__ == "__main__":
    key = jax.random.PRNGKey(0)
    kx, kp = jax.random.split(key)
    x = jax.random.normal(kx, (BATCH, N_CTX, N_STATE), jnp.float32)
    params = make_params(kp)
    packed = pack_params(params)                 # one-time packing (init time)
    packed = jax.tree_util.tree_map(jax.block_until_ready, packed)

    out = residual_attention_block(x, packed)
    out = jax.block_until_ready(out)

    ref = reference_jax(x, params)
    assert out.shape == (BATCH, N_CTX, N_STATE)
    # f32 everywhere, exact softmax divide; remaining diffs are rounding-order only
    # (fused QKV matmul, scale folded once into q vs hd**-0.25 on q and k).
    assert jnp.allclose(out, ref, atol=1e-4, rtol=1e-4), "mismatch vs JAX reference"
    print("KERNEL_OK")
</pallas_src>

<mosaic_0001>
module attributes {stable_mosaic.version = 11 : i64} {
  func.func @residual_block_kernel(%arg0: i32, %arg1: memref<1x8x32xf32, #tpu.memory_space<vmem>>, %arg2: memref<32x96xf32, #tpu.memory_space<vmem>>, %arg3: memref<32x32xf32, #tpu.memory_space<vmem>>, %arg4: memref<32x128xf32, #tpu.memory_space<vmem>>, %arg5: memref<128x32xf32, #tpu.memory_space<vmem>>, %arg6: memref<8x128xf32, #tpu.memory_space<vmem>>, %arg7: memref<1x8x32xf32, #tpu.memory_space<vmem>>) attributes {dimension_semantics = [#tpu.dimension_semantics<parallel>], iteration_bounds = array<i64: 2>, scalar_prefetch = 0 : i64, scratch_operands = 0 : i64, tpu.core_type = #tpu.core_type<tc>, window_params = [{transform_indices = @transform_0, window_bounds = array<i64: 1, 8, 32>}, {pipeline_mode = #tpu.pipeline_mode<synchronous>, transform_indices = @transform_1, window_bounds = array<i64: 32, 96>}, {pipeline_mode = #tpu.pipeline_mode<synchronous>, transform_indices = @transform_2, window_bounds = array<i64: 32, 32>}, {pipeline_mode = #tpu.pipeline_mode<synchronous>, transform_indices = @transform_3, window_bounds = array<i64: 32, 128>}, {pipeline_mode = #tpu.pipeline_mode<synchronous>, transform_indices = @transform_4, window_bounds = array<i64: 128, 32>}, {pipeline_mode = #tpu.pipeline_mode<synchronous>, transform_indices = @transform_5, window_bounds = array<i64: 8, 128>}, {transform_indices = @transform_6, window_bounds = array<i64: 1, 8, 32>}]} {
    %c0 = arith.constant 0 : index
    %c0_0 = arith.constant 0 : index
    %c0_1 = arith.constant 0 : index
    %0 = vector.load %arg1[%c0, %c0_0, %c0_1] : memref<1x8x32xf32, #tpu.memory_space<vmem>>, vector<1x8x32xf32>
    %1 = vector.shape_cast %0 : vector<1x8x32xf32> to vector<8x32xf32>
    %c0_2 = arith.constant 0 : index
    %c0_3 = arith.constant 0 : index
    %2 = vector.load %arg6[%c0_2, %c0_3] : memref<8x128xf32, #tpu.memory_space<vmem>>, vector<8x128xf32>
    %3 = vector.extract_strided_slice %2 {offsets = [0, 0], sizes = [1, 32], strides = [1, 1]} : vector<8x128xf32> to vector<1x32xf32>
    %4 = vector.extract_strided_slice %2 {offsets = [1, 0], sizes = [1, 32], strides = [1, 1]} : vector<8x128xf32> to vector<1x32xf32>
    %5 = vector.extract_strided_slice %2 {offsets = [2, 0], sizes = [1, 96], strides = [1, 1]} : vector<8x128xf32> to vector<1x96xf32>
    %6 = vector.extract_strided_slice %2 {offsets = [3, 0], sizes = [1, 32], strides = [1, 1]} : vector<8x128xf32> to vector<1x32xf32>
    %7 = vector.extract_strided_slice %2 {offsets = [4, 0], sizes = [1, 32], strides = [1, 1]} : vector<8x128xf32> to vector<1x32xf32>
    %8 = vector.extract_strided_slice %2 {offsets = [5, 0], sizes = [1, 32], strides = [1, 1]} : vector<8x128xf32> to vector<1x32xf32>
    %9 = vector.extract_strided_slice %2 {offsets = [6, 0], sizes = [1, 128], strides = [1, 1]} : vector<8x128xf32> to vector<1x128xf32>
    %10 = vector.extract_strided_slice %2 {offsets = [7, 0], sizes = [1, 32], strides = [1, 1]} : vector<8x128xf32> to vector<1x32xf32>
    %cst = arith.constant dense<0.000000e+00> : vector<8xf32>
    %11 = vector.multi_reduction <add>, %1, %cst [1] : vector<8x32xf32> to vector<8xf32>
    %12 = vector.shape_cast %11 : vector<8xf32> to vector<8x1xf32>
    %cst_4 = arith.constant 3.200000e+01 : f32
    %13 = vector.broadcast %cst_4 : f32 to vector<8x1xf32>
    %14 = arith.divf %12, %13 : vector<8x1xf32>
    %15 = vector.broadcast %14 : vector<8x1xf32> to vector<8x32xf32>
    %16 = arith.subf %1, %15 : vector<8x32xf32>
    %17 = arith.mulf %16, %16 : vector<8x32xf32>
    %cst_5 = arith.constant dense<0.000000e+00> : vector<8xf32>
    %18 = vector.multi_reduction <add>, %17, %cst_5 [1] : vector<8x32xf32> to vector<8xf32>
    %19 = vector.shape_cast %18 : vector<8xf32> to vector<8x1xf32>
    %cst_6 = arith.constant 3.200000e+01 : f32
    %20 = vector.broadcast %cst_6 : f32 to vector<8x1xf32>
    %21 = arith.divf %19, %20 : vector<8x1xf32>
    %22 = vector.broadcast %14 : vector<8x1xf32> to vector<8x32xf32>
    %23 = arith.subf %1, %22 : vector<8x32xf32>
    %cst_7 = arith.constant 9.99999974E-6 : f32
    %24 = vector.broadcast %cst_7 : f32 to vector<8x1xf32>
    %25 = arith.addf %21, %24 : vector<8x1xf32>
    %26 = math.rsqrt %25 : vector<8x1xf32>
    %27 = vector.broadcast %26 : vector<8x1xf32> to vector<8x32xf32>
    %28 = arith.mulf %23, %27 : vector<8x32xf32>
    %29 = vector.broadcast %3 : vector<1x32xf32> to vector<8x32xf32>
    %30 = arith.mulf %28, %29 : vector<8x32xf32>
    %31 = vector.broadcast %4 : vector<1x32xf32> to vector<8x32xf32>
    %32 = arith.addf %30, %31 : vector<8x32xf32>
    %c0_8 = arith.constant 0 : index
    %c0_9 = arith.constant 0 : index
    %33 = vector.load %arg2[%c0_8, %c0_9] : memref<32x96xf32, #tpu.memory_space<vmem>>, vector<32x96xf32>
    %cst_10 = arith.constant dense<0.000000e+00> : vector<8x96xf32>
    %34 = tpu.matmul %32, %33, %cst_10 {dimension_numbers = #tpu.dot_dimension_numbers<[1], [0], [0], [1], [0, 0, 1, 1], [], []>} : vector<8x32xf32>, vector<32x96xf32>, vector<8x96xf32> -> vector<8x96xf32>
    %35 = vector.broadcast %5 : vector<1x96xf32> to vector<8x96xf32>
    %36 = arith.addf %34, %35 : vector<8x96xf32>
    %37 = vector.extract_strided_slice %36 {offsets = [0, 0], sizes = [8, 8], strides = [1, 1]} : vector<8x96xf32> to vector<8x8xf32>
    %38 = vector.extract_strided_slice %36 {offsets = [0, 32], sizes = [8, 8], strides = [1, 1]} : vector<8x96xf32> to vector<8x8xf32>
    %39 = vector.extract_strided_slice %36 {offsets = [0, 64], sizes = [8, 8], strides = [1, 1]} : vector<8x96xf32> to vector<8x8xf32>
    "tpu.trace_start"() <{level = 10 : i32, message = "qd,kd->qk"}> : () -> ()
    %cst_11 = arith.constant dense<0.000000e+00> : vector<8x8xf32>
    %40 = tpu.matmul %37, %38, %cst_11 {dimension_numbers = #tpu.dot_dimension_numbers<[1], [1], [0], [0], [0, 0, 1, 0], [], []>} : vector<8x8xf32>, vector<8x8xf32>, vector<8x8xf32> -> vector<8x8xf32>
    "tpu.trace_stop"() : () -> ()
    %cst_12 = arith.constant dense<0xFF800000> : vector<8xf32>
    %41 = vector.multi_reduction <maximumf>, %40, %cst_12 [1] : vector<8x8xf32> to vector<8xf32>
    %42 = vector.shape_cast %41 : vector<8xf32> to vector<8x1xf32>
    %43 = vector.broadcast %42 : vector<8x1xf32> to vector<8x8xf32>
    %44 = arith.subf %40, %43 : vector<8x8xf32>
    %45 = math.exp %44 : vector<8x8xf32>
    %cst_13 = arith.constant dense<0.000000e+00> : vector<8xf32>
    %46 = vector.multi_reduction <add>, %45, %cst_13 [1] : vector<8x8xf32> to vector<8xf32>
    %47 = vector.shape_cast %46 : vector<8xf32> to vector<8x1xf32>
    %48 = vector.broadcast %47 : vector<8x1xf32> to vector<8x8xf32>
    %49 = arith.divf %45, %48 : vector<8x8xf32>
    %cst_14 = arith.constant dense<0.000000e+00> : vector<8x8xf32>
    %50 = tpu.matmul %49, %39, %cst_14 {dimension_numbers = #tpu.dot_dimension_numbers<[1], [0], [0], [1], [0, 0, 1, 1], [], []>} : vector<8x8xf32>, vector<8x8xf32>, vector<8x8xf32> -> vector<8x8xf32>
    %51 = vector.extract_strided_slice %36 {offsets = [0, 8], sizes = [8, 8], strides = [1, 1]} : vector<8x96xf32> to vector<8x8xf32>
    %52 = vector.extract_strided_slice %36 {offsets = [0, 40], sizes = [8, 8], strides = [1, 1]} : vector<8x96xf32> to vector<8x8xf32>
    %53 = vector.extract_strided_slice %36 {offsets = [0, 72], sizes = [8, 8], strides = [1, 1]} : vector<8x96xf32> to vector<8x8xf32>
    "tpu.trace_start"() <{level = 10 : i32, message = "qd,kd->qk"}> : () -> ()
    %cst_15 = arith.constant dense<0.000000e+00> : vector<8x8xf32>
    %54 = tpu.matmul %51, %52, %cst_15 {dimension_numbers = #tpu.dot_dimension_numbers<[1], [1], [0], [0], [0, 0, 1, 0], [], []>} : vector<8x8xf32>, vector<8x8xf32>, vector<8x8xf32> -> vector<8x8xf32>
    "tpu.trace_stop"() : () -> ()
    %cst_16 = arith.constant dense<0xFF800000> : vector<8xf32>
    %55 = vector.multi_reduction <maximumf>, %54, %cst_16 [1] : vector<8x8xf32> to vector<8xf32>
    %56 = vector.shape_cast %55 : vector<8xf32> to vector<8x1xf32>
    %57 = vector.broadcast %56 : vector<8x1xf32> to vector<8x8xf32>
    %58 = arith.subf %54, %57 : vector<8x8xf32>
    %59 = math.exp %58 : vector<8x8xf32>
    %cst_17 = arith.constant dense<0.000000e+00> : vector<8xf32>
    %60 = vector.multi_reduction <add>, %59, %cst_17 [1] : vector<8x8xf32> to vector<8xf32>
    %61 = vector.shape_cast %60 : vector<8xf32> to vector<8x1xf32>
    %62 = vector.broadcast %61 : vector<8x1xf32> to vector<8x8xf32>
    %63 = arith.divf %59, %62 : vector<8x8xf32>
    %cst_18 = arith.constant dense<0.000000e+00> : vector<8x8xf32>
    %64 = tpu.matmul %63, %53, %cst_18 {dimension_numbers = #tpu.dot_dimension_numbers<[1], [0], [0], [1], [0, 0, 1, 1], [], []>} : vector<8x8xf32>, vector<8x8xf32>, vector<8x8xf32> -> vector<8x8xf32>
    %65 = vector.extract_strided_slice %36 {offsets = [0, 16], sizes = [8, 8], strides = [1, 1]} : vector<8x96xf32> to vector<8x8xf32>
    %66 = vector.extract_strided_slice %36 {offsets = [0, 48], sizes = [8, 8], strides = [1, 1]} : vector<8x96xf32> to vector<8x8xf32>
    %67 = vector.extract_strided_slice %36 {offsets = [0, 80], sizes = [8, 8], strides = [1, 1]} : vector<8x96xf32> to vector<8x8xf32>
    "tpu.trace_start"() <{level = 10 : i32, message = "qd,kd->qk"}> : () -> ()
    %cst_19 = arith.constant dense<0.000000e+00> : vector<8x8xf32>
    %68 = tpu.matmul %65, %66, %cst_19 {dimension_numbers = #tpu.dot_dimension_numbers<[1], [1], [0], [0], [0, 0, 1, 0], [], []>} : vector<8x8xf32>, vector<8x8xf32>, vector<8x8xf32> -> vector<8x8xf32>
    "tpu.trace_stop"() : () -> ()
    %cst_20 = arith.constant dense<0xFF800000> : vector<8xf32>
    %69 = vector.multi_reduction <maximumf>, %68, %cst_20 [1] : vector<8x8xf32> to vector<8xf32>
    %70 = vector.shape_cast %69 : vector<8xf32> to vector<8x1xf32>
    %71 = vector.broadcast %70 : vector<8x1xf32> to vector<8x8xf32>
    %72 = arith.subf %68, %71 : vector<8x8xf32>
    %73 = math.exp %72 : vector<8x8xf32>
    %cst_21 = arith.constant dense<0.000000e+00> : vector<8xf32>
    %74 = vector.multi_reduction <add>, %73, %cst_21 [1] : vector<8x8xf32> to vector<8xf32>
    %75 = vector.shape_cast %74 : vector<8xf32> to vector<8x1xf32>
    %76 = vector.broadcast %75 : vector<8x1xf32> to vector<8x8xf32>
    %77 = arith.divf %73, %76 : vector<8x8xf32>
    %cst_22 = arith.constant dense<0.000000e+00> : vector<8x8xf32>
    %78 = tpu.matmul %77, %67, %cst_22 {dimension_numbers = #tpu.dot_dimension_numbers<[1], [0], [0], [1], [0, 0, 1, 1], [], []>} : vector<8x8xf32>, vector<8x8xf32>, vector<8x8xf32> -> vector<8x8xf32>
    %79 = vector.extract_strided_slice %36 {offsets = [0, 24], sizes = [8, 8], strides = [1, 1]} : vector<8x96xf32> to vector<8x8xf32>
    %80 = vector.extract_strided_slice %36 {offsets = [0, 56], sizes = [8, 8], strides = [1, 1]} : vector<8x96xf32> to vector<8x8xf32>
    %81 = vector.extract_strided_slice %36 {offsets = [0, 88], sizes = [8, 8], strides = [1, 1]} : vector<8x96xf32> to vector<8x8xf32>
    "tpu.trace_start"() <{level = 10 : i32, message = "qd,kd->qk"}> : () -> ()
    %cst_23 = arith.constant dense<0.000000e+00> : vector<8x8xf32>
    %82 = tpu.matmul %79, %80, %cst_23 {dimension_numbers = #tpu.dot_dimension_numbers<[1], [1], [0], [0], [0, 0, 1, 0], [], []>} : vector<8x8xf32>, vector<8x8xf32>, vector<8x8xf32> -> vector<8x8xf32>
    "tpu.trace_stop"() : () -> ()
    %cst_24 = arith.constant dense<0xFF800000> : vector<8xf32>
    %83 = vector.multi_reduction <maximumf>, %82, %cst_24 [1] : vector<8x8xf32> to vector<8xf32>
    %84 = vector.shape_cast %83 : vector<8xf32> to vector<8x1xf32>
    %85 = vector.broadcast %84 : vector<8x1xf32> to vector<8x8xf32>
    %86 = arith.subf %82, %85 : vector<8x8xf32>
    %87 = math.exp %86 : vector<8x8xf32>
    %cst_25 = arith.constant dense<0.000000e+00> : vector<8xf32>
    %88 = vector.multi_reduction <add>, %87, %cst_25 [1] : vector<8x8xf32> to vector<8xf32>
    %89 = vector.shape_cast %88 : vector<8xf32> to vector<8x1xf32>
    %90 = vector.broadcast %89 : vector<8x1xf32> to vector<8x8xf32>
    %91 = arith.divf %87, %90 : vector<8x8xf32>
    %cst_26 = arith.constant dense<0.000000e+00> : vector<8x8xf32>
    %92 = tpu.matmul %91, %81, %cst_26 {dimension_numbers = #tpu.dot_dimension_numbers<[1], [0], [0], [1], [0, 0, 1, 1], [], []>} : vector<8x8xf32>, vector<8x8xf32>, vector<8x8xf32> -> vector<8x8xf32>
    %93 = tpu.concatenate %50, %64, %78, %92 in 1 : vector<8x8xf32>, vector<8x8xf32>, vector<8x8xf32>, vector<8x8xf32> -> vector<8x32xf32>
    %c0_27 = arith.constant 0 : index
    %c0_28 = arith.constant 0 : index
    %94 = vector.load %arg3[%c0_27, %c0_28] : memref<32x32xf32, #tpu.memory_space<vmem>>, vector<32x32xf32>
    %cst_29 = arith.constant dense<0.000000e+00> : vector<8x32xf32>
    %95 = tpu.matmul %93, %94, %cst_29 {dimension_numbers = #tpu.dot_dimension_numbers<[1], [0], [0], [1], [0, 0, 1, 1], [], []>} : vector<8x32xf32>, vector<32x32xf32>, vector<8x32xf32> -> vector<8x32xf32>
    %96 = vector.broadcast %6 : vector<1x32xf32> to vector<8x32xf32>
    %97 = arith.addf %95, %96 : vector<8x32xf32>
    %98 = arith.addf %1, %97 : vector<8x32xf32>
    %cst_30 = arith.constant dense<0.000000e+00> : vector<8xf32>
    %99 = vector.multi_reduction <add>, %98, %cst_30 [1] : vector<8x32xf32> to vector<8xf32>
    %100 = vector.shape_cast %99 : vector<8xf32> to vector<8x1xf32>
    %cst_31 = arith.constant 3.200000e+01 : f32
    %101 = vector.broadcast %cst_31 : f32 to vector<8x1xf32>
    %102 = arith.divf %100, %101 : vector<8x1xf32>
    %103 = vector.broadcast %102 : vector<8x1xf32> to vector<8x32xf32>
    %104 = arith.subf %98, %103 : vector<8x32xf32>
    %105 = arith.mulf %104, %104 : vector<8x32xf32>
    %cst_32 = arith.constant dense<0.000000e+00> : vector<8xf32>
    %106 = vector.multi_reduction <add>, %105, %cst_32 [1] : vector<8x32xf32> to vector<8xf32>
    %107 = vector.shape_cast %106 : vector<8xf32> to vector<8x1xf32>
    %cst_33 = arith.constant 3.200000e+01 : f32
    %108 = vector.broadcast %cst_33 : f32 to vector<8x1xf32>
    %109 = arith.divf %107, %108 : vector<8x1xf32>
    %110 = vector.broadcast %102 : vector<8x1xf32> to vector<8x32xf32>
    %111 = arith.subf %98, %110 : vector<8x32xf32>
    %cst_34 = arith.constant 9.99999974E-6 : f32
    %112 = vector.broadcast %cst_34 : f32 to vector<8x1xf32>
    %113 = arith.addf %109, %112 : vector<8x1xf32>
    %114 = math.rsqrt %113 : vector<8x1xf32>
    %115 = vector.broadcast %114 : vector<8x1xf32> to vector<8x32xf32>
    %116 = arith.mulf %111, %115 : vector<8x32xf32>
    %117 = vector.broadcast %7 : vector<1x32xf32> to vector<8x32xf32>
    %118 = arith.mulf %116, %117 : vector<8x32xf32>
    %119 = vector.broadcast %8 : vector<1x32xf32> to vector<8x32xf32>
    %120 = arith.addf %118, %119 : vector<8x32xf32>
    %c0_35 = arith.constant 0 : index
    %c0_36 = arith.constant 0 : index
    %121 = vector.load %arg4[%c0_35, %c0_36] : memref<32x128xf32, #tpu.memory_space<vmem>>, vector<32x128xf32>
    %cst_37 = arith.constant dense<0.000000e+00> : vector<8x128xf32>
    %122 = tpu.matmul %120, %121, %cst_37 {dimension_numbers = #tpu.dot_dimension_numbers<[1], [0], [0], [1], [0, 0, 1, 1], [], []>} : vector<8x32xf32>, vector<32x128xf32>, vector<8x128xf32> -> vector<8x128xf32>
    %123 = vector.broadcast %9 : vector<1x128xf32> to vector<8x128xf32>
    %124 = arith.addf %122, %123 : vector<8x128xf32>
    %cst_38 = arith.constant 5.000000e-01 : f32
    %125 = vector.broadcast %cst_38 : f32 to vector<8x128xf32>
    %126 = arith.mulf %125, %124 : vector<8x128xf32>
    %cst_39 = arith.constant 0.707106769 : f32
    %127 = vector.broadcast %cst_39 : f32 to vector<8x128xf32>
    %128 = arith.mulf %124, %127 : vector<8x128xf32>
    %129 = math.erf %128 : vector<8x128xf32>
    %cst_40 = arith.constant 1.000000e+00 : f32
    %130 = vector.broadcast %cst_40 : f32 to vector<8x128xf32>
    %131 = arith.addf %130, %129 : vector<8x128xf32>
    %132 = arith.mulf %126, %131 : vector<8x128xf32>
    %c0_41 = arith.constant 0 : index
    %c0_42 = arith.constant 0 : index
    %133 = vector.load %arg5[%c0_41, %c0_42] : memref<128x32xf32, #tpu.memory_space<vmem>>, vector<128x32xf32>
    %cst_43 = arith.constant dense<0.000000e+00> : vector<8x32xf32>
    %134 = tpu.matmul %132, %133, %cst_43 {dimension_numbers = #tpu.dot_dimension_numbers<[1], [0], [0], [1], [0, 0, 1, 1], [], []>} : vector<8x128xf32>, vector<128x32xf32>, vector<8x32xf32> -> vector<8x32xf32>
    %135 = vector.broadcast %10 : vector<1x32xf32> to vector<8x32xf32>
    %136 = arith.addf %134, %135 : vector<8x32xf32>
    %137 = arith.addf %98, %136 : vector<8x32xf32>
    %c0_44 = arith.constant 0 : index
    %c0_45 = arith.constant 0 : index
    %c0_46 = arith.constant 0 : index
    %138 = vector.load %arg7[%c0_44, %c0_45, %c0_46] : memref<1x8x32xf32, #tpu.memory_space<vmem>>, vector<1x8x32xf32>
    %139 = vector.shape_cast %138 : vector<1x8x32xf32> to vector<8x32xf32>
    %140 = vector.shape_cast %137 : vector<8x32xf32> to vector<1x8x32xf32>
    tpu.vector_store %arg7[%c0_44, %c0_45, %c0_46], %140 {strides = array<i32>} : memref<1x8x32xf32, #tpu.memory_space<vmem>>, vector<1x8x32xf32>,
    return
  }
  func.func @transform_0(%arg0: i32) -> (i32, i32, i32) {
    %c0_i32 = arith.constant 0 : i32
    %c0_i32_0 = arith.constant 0 : i32
    %c0_i32_1 = arith.constant 0 : i32
    return %arg0, %c0_i32, %c0_i32_0 : i32, i32, i32
  }
  func.func @transform_1(%arg0: i32) -> (i32, i32) {
    %c0_i32 = arith.constant 0 : i32
    %c0_i32_0 = arith.constant 0 : i32
    %c0_i32_1 = arith.constant 0 : i32
    return %c0_i32, %c0_i32_0 : i32, i32
  }
  func.func @transform_2(%arg0: i32) -> (i32, i32) {
    %c0_i32 = arith.constant 0 : i32
    %c0_i32_0 = arith.constant 0 : i32
    %c0_i32_1 = arith.constant 0 : i32
    return %c0_i32, %c0_i32_0 : i32, i32
  }
  func.func @transform_3(%arg0: i32) -> (i32, i32) {
    %c0_i32 = arith.constant 0 : i32
    %c0_i32_0 = arith.constant 0 : i32
    %c0_i32_1 = arith.constant 0 : i32
    return %c0_i32, %c0_i32_0 : i32, i32
  }
  func.func @transform_4(%arg0: i32) -> (i32, i32) {
    %c0_i32 = arith.constant 0 : i32
    %c0_i32_0 = arith.constant 0 : i32
    %c0_i32_1 = arith.constant 0 : i32
    return %c0_i32, %c0_i32_0 : i32, i32
  }
  func.func @transform_5(%arg0: i32) -> (i32, i32) {
    %c0_i32 = arith.constant 0 : i32
    %c0_i32_0 = arith.constant 0 : i32
    %c0_i32_1 = arith.constant 0 : i32
    return %c0_i32, %c0_i32_0 : i32, i32
  }
  func.func @transform_6(%arg0: i32) -> (i32, i32, i32) {
    %c0_i32 = arith.constant 0 : i32
    %c0_i32_0 = arith.constant 0 : i32
    %c0_i32_1 = arith.constant 0 : i32
    return %arg0, %c0_i32, %c0_i32_0 : i32, i32, i32
  }
}

</mosaic_0001>

<llo_original>
// kernel: tpu_custom_call.1
$region0: #{tpu_custom_call.1}
  #allocation0 [shape = 'u32[]', space=smem, size = 0x4, offset = 0x4, fixed_abs, tag = 'smem constant byte address 0x4 - core index']
  #allocation1 [shape = 'u32[144,128]{1,0:T(1,128)}', space=vmem, size = 0x12000, scoped, tag = 'internal scratch']
  %s0 = inlined_call_operand.vmem [shape: f32[2,8,32], index: 0, kind: input, shape index: {}]
  %s1 = inlined_call_operand.vmem [shape: f32[32,96], index: 1, kind: input, shape index: {}]
  %s2 = inlined_call_operand.vmem [shape: f32[32,32], index: 2, kind: input, shape index: {}]
  %s3 = inlined_call_operand.vmem [shape: f32[32,128], index: 3, kind: input, shape index: {}]
  %s4 = inlined_call_operand.vmem [shape: f32[128,32], index: 4, kind: input, shape index: {}]
  %s5 = inlined_call_operand.vmem [shape: f32[8,128], index: 5, kind: input, shape index: {}]
  %s6 = inlined_call_operand.hbm [shape: f32[2,8,32], index: 6, kind: output, shape index: {}]
  %s7 = sld [smem:[#allocation0]]
  $region57: #{tpu_custom_call.1} parent=0
    _
  %s9 = ssub.s32 1, %s7
  %s10 = scalar_select 0, %s9, %s7
  $region1: #{tpu_custom_call.1} parent=0
    #allocation2 [shape = 'u8[8192]{0}', space=vmem, size = 0x2000, scoped, tag = 'output window, operand 0']
    #allocation3 [shape = 's32[2]{0}', space=sflag, size = 0x8, scoped, tag = 'scoped memory for tpu_custom_call.1']
    %11 = vsyncpa [#allocation3], 0
    %s12 = scalar_lea.sflag [#allocation3], 1
    %13 = vsyncpa %s12, 0
    loop: start=0, step=1, limit=4
    $region2: #{tpu_custom_call.1} parent=1 // loop_pre_header
      _
    $region3: #{tpu_custom_call.1} parent=1 // loop_header
      %s15 = sphi 0, %s19
      %p16 = scmp.ge.s32.totalorder %s15, 4
      %s25 = sphi 0, %s27
      %s28 = sphi 0, %s25
      %s29 = sphi 0, %s28
      %s45 = sphi 0, %s29
      %s49 = sphi 0, %s49
      %s51 = sphi 0, %s49
      %s52 = sphi 0, %s51
      %s66 = sphi 0, %s52
      %s70 = sphi 0, %s70
      %s72 = sphi 0, %s70
      %s73 = sphi 0, %s72
      %s87 = sphi 0, %s73
      %s91 = sphi 0, %s91
      %s93 = sphi 0, %s91
      %s94 = sphi 0, %s93
      %s108 = sphi 0, %s94
      %s112 = sphi 0, %s112
      %s114 = sphi 0, %s112
      %s115 = sphi 0, %s114
      %s129 = sphi 0, %s115
      %s133 = sphi 0, %s133
      %s135 = sphi 0, %s133
      %s136 = sphi 0, %s135
      %s150 = sphi 0, %s136
      %s156 = sphi 0, %s158
      %s159 = sphi 0, %s156
      %s160 = sphi 0, %s159
      %s176 = sphi 0, %s160
    $region4: #{tpu_custom_call.1} parent=1 // loop_header_branch
      %18 = sbr.rel (%p16) target = $region8
    $region5: #{tpu_custom_call.1} parent=1 // loop_body
      %s20 = ssub.s32 %s15, 1
      %s21 = ssub.s32 %s15, 2
      %s22 = sadd.s32 %s15, 1
      %s23 = ssub.s32 %s15, %s22
      %p24 = scmp.eq.s32.totalorder %s23, 0
      %s26 = sadd.s32 %s25, 1
      %s27 = scalar_select %p24, %s25, %s26
      %p30 = pneg %p24
      %p31 = scmp.eq.s32.totalorder %s15, 1
      %p32 = por %p30, %p31
      %p33 = scmp.ne.s32.totalorder %s25, %s28
      %p34 = scmp.eq.s32.totalorder %s15, 0
      %p35 = por %p33, %p34
      %p36 = scmp.ne.s32.totalorder %s25, %s28
      %p37 = scmp.eq.s32.totalorder %s20, 1
      %p38 = por %p36, %p37
      %p39 = scmp.ne.s32.totalorder %s28, %s29
      %p40 = scmp.eq.s32.totalorder %s20, 0
      %p41 = por %p39, %p40
      %p42 = scmp.ne.s32.totalorder %s28, %s29
      %p43 = scmp.eq.s32.totalorder %s21, 1
      %p44 = por %p42, %p43
      %p46 = scmp.ne.s32.totalorder %s29, %s45
      %p47 = scmp.eq.s32.totalorder %s21, 0
      %p48 = por %p46, %p47
      %s50 = sadd.s32 %s49, 1
      %p53 = scmp.eq.s32.totalorder %s15, 1
      %p54 = scmp.ne.s32.totalorder %s49, %s51
      %p55 = scmp.eq.s32.totalorder %s15, 0
      %p56 = por %p54, %p55
      %p57 = scmp.ne.s32.totalorder %s49, %s51
      %p58 = scmp.eq.s32.totalorder %s20, 1
      %p59 = por %p57, %p58
      %p60 = scmp.ne.s32.totalorder %s51, %s52
      %p61 = scmp.eq.s32.totalorder %s20, 0
      %p62 = por %p60, %p61
      %p63 = scmp.ne.s32.totalorder %s51, %s52
      %p64 = scmp.eq.s32.totalorder %s21, 1
      %p65 = por %p63, %p64
      %p67 = scmp.ne.s32.totalorder %s52, %s66
      %p68 = scmp.eq.s32.totalorder %s21, 0
      %p69 = por %p67, %p68
      %s71 = sadd.s32 %s70, 1
      %p74 = scmp.eq.s32.totalorder %s15, 1
      %p75 = scmp.ne.s32.totalorder %s70, %s72
      %p76 = scmp.eq.s32.totalorder %s15, 0
      %p77 = por %p75, %p76
      %p78 = scmp.ne.s32.totalorder %s70, %s72
      %p79 = scmp.eq.s32.totalorder %s20, 1
      %p80 = por %p78, %p79
      %p81 = scmp.ne.s32.totalorder %s72, %s73
      %p82 = scmp.eq.s32.totalorder %s20, 0
      %p83 = por %p81, %p82
      %p84 = scmp.ne.s32.totalorder %s72, %s73
      %p85 = scmp.eq.s32.totalorder %s21, 1
      %p86 = por %p84, %p85
      %p88 = scmp.ne.s32.totalorder %s73, %s87
      %p89 = scmp.eq.s32.totalorder %s21, 0
      %p90 = por %p88, %p89
      %s92 = sadd.s32 %s91, 1
      %p95 = scmp.eq.s32.totalorder %s15, 1
      %p96 = scmp.ne.s32.totalorder %s91, %s93
      %p97 = scmp.eq.s32.totalorder %s15, 0
      %p98 = por %p96, %p97
      %p99 = scmp.ne.s32.totalorder %s91, %s93
      %p100 = scmp.eq.s32.totalorder %s20, 1
      %p101 = por %p99, %p100
      %p102 = scmp.ne.s32.totalorder %s93, %s94
      %p103 = scmp.eq.s32.totalorder %s20, 0
      %p104 = por %p102, %p103
      %p105 = scmp.ne.s32.totalorder %s93, %s94
      %p106 = scmp.eq.s32.totalorder %s21, 1
      %p107 = por %p105, %p106
      %p109 = scmp.ne.s32.totalorder %s94, %s108
      %p110 = scmp.eq.s32.totalorder %s21, 0
      %p111 = por %p109, %p110
      %s113 = sadd.s32 %s112, 1
      %p116 = scmp.eq.s32.totalorder %s15, 1
      %p117 = scmp.ne.s32.totalorder %s112, %s114
      %p118 = scmp.eq.s32.totalorder %s15, 0
      %p119 = por %p117, %p118
      %p120 = scmp.ne.s32.totalorder %s112, %s114
      %p121 = scmp.eq.s32.totalorder %s20, 1
      %p122 = por %p120, %p121
      %p123 = scmp.ne.s32.totalorder %s114, %s115
      %p124 = scmp.eq.s32.totalorder %s20, 0
      %p125 = por %p123, %p124
      %p126 = scmp.ne.s32.totalorder %s114, %s115
      %p127 = scmp.eq.s32.totalorder %s21, 1
      %p128 = por %p126, %p127
      %p130 = scmp.ne.s32.totalorder %s115, %s129
      %p131 = scmp.eq.s32.totalorder %s21, 0
      %p132 = por %p130, %p131
      %s134 = sadd.s32 %s133, 1
      %p137 = scmp.eq.s32.totalorder %s15, 1
      %p138 = scmp.ne.s32.totalorder %s133, %s135
      %p139 = scmp.eq.s32.totalorder %s15, 0
      %p140 = por %p138, %p139
      %p141 = scmp.ne.s32.totalorder %s133, %s135
      %p142 = scmp.eq.s32.totalorder %s20, 1
      %p143 = por %p141, %p142
      %p144 = scmp.ne.s32.totalorder %s135, %s136
      %p145 = scmp.eq.s32.totalorder %s20, 0
      %p146 = por %p144, %p145
      %p147 = scmp.ne.s32.totalorder %s135, %s136
      %p148 = scmp.eq.s32.totalorder %s21, 1
      %p149 = por %p147, %p148
      %p151 = scmp.ne.s32.totalorder %s136, %s150
      %p152 = scmp.eq.s32.totalorder %s21, 0
      %p153 = por %p151, %p152
      %s154 = ssub.s32 %s15, %s22
      %p155 = scmp.eq.s32.totalorder %s154, 0
      %s157 = sadd.s32 %s156, 1
      %s158 = scalar_select %p155, %s156, %s157
      %p161 = pneg %p155
      %p162 = scmp.eq.s32.totalorder %s15, 1
      %p163 = por %p161, %p162
      %p164 = scmp.ne.s32.totalorder %s156, %s159
      %p165 = scmp.eq.s32.totalorder %s15, 0
      %p166 = por %p164, %p165
      %p167 = scmp.ne.s32.totalorder %s156, %s159
      %p168 = scmp.eq.s32.totalorder %s20, 1
      %p169 = por %p167, %p168
      %p170 = scmp.ne.s32.totalorder %s159, %s160
      %p171 = scmp.eq.s32.totalorder %s20, 0
      %p172 = por %p170, %p171
      %p173 = scmp.ne.s32.totalorder %s159, %s160
      %p174 = scmp.eq.s32.totalorder %s21, 1
      %p175 = por %p173, %p174
      %p177 = scmp.ne.s32.totalorder %s160, %s176
      %p178 = scmp.eq.s32.totalorder %s21, 0
      %p179 = por %p177, %p178
      %p180 = scmp.le.s32.totalorder 1, %s15
      %p181 = scmp.lt.s32.totalorder %s15, 3
      %p182 = pnand %p180, %p181
      %p183 = pneg %p182
      // Predicated region
      $region9: #{tpu_custom_call.1} parent=5 // pred_check
        _
      $region10: #{tpu_custom_call.1} parent=5 // pred_check_branch
        %185 = sbr.rel (%p182) target = $region12
      $region11: #{tpu_custom_call.1} parent=5 // pred_region
        %s186 = ssub.s32 %s15, 1
        // Predicated region
        $region13: #{tpu_custom_call.1} parent=11 // pred_check
          %p187 = pneg %p62
        $region14: #{tpu_custom_call.1} parent=11 // pred_check_branch
          %189 = sbr.rel (%p187) target = $region16
        $region15: #{tpu_custom_call.1} parent=11 // pred_region
          _
        $region16: #{tpu_custom_call.1} parent=11 // pred_fallthru
          _
        // Predicated region
        $region17: #{tpu_custom_call.1} parent=11 // pred_check
          %p190 = pneg %p83
        $region18: #{tpu_custom_call.1} parent=11 // pred_check_branch
          %192 = sbr.rel (%p190) target = $region20
        $region19: #{tpu_custom_call.1} parent=11 // pred_region
          _
        $region20: #{tpu_custom_call.1} parent=11 // pred_fallthru
          _
        // Predicated region
        $region21: #{tpu_custom_call.1} parent=11 // pred_check
          %p193 = pneg %p104
        $region22: #{tpu_custom_call.1} parent=11 // pred_check_branch
          %195 = sbr.rel (%p193) target = $region24
        $region23: #{tpu_custom_call.1} parent=11 // pred_region
          _
        $region24: #{tpu_custom_call.1} parent=11 // pred_fallthru
          _
        // Predicated region
        $region25: #{tpu_custom_call.1} parent=11 // pred_check
          %p196 = pneg %p125
        $region26: #{tpu_custom_call.1} parent=11 // pred_check_branch
          %198 = sbr.rel (%p196) target = $region28
        $region27: #{tpu_custom_call.1} parent=11 // pred_region
          _
        $region28: #{tpu_custom_call.1} parent=11 // pred_fallthru
          _
        // Predicated region
        $region29: #{tpu_custom_call.1} parent=11 // pred_check
          %p199 = pneg %p146
        $region30: #{tpu_custom_call.1} parent=11 // pred_check_branch
          %201 = sbr.rel (%p199) target = $region32
        $region31: #{tpu_custom_call.1} parent=11 // pred_region
          _
        $region32: #{tpu_custom_call.1} parent=11 // pred_fallthru
          _
      $region12: #{tpu_custom_call.1} parent=5 // pred_fallthru
        _
      %p202 = scmp.lt.s32.totalorder %s15, 2
      // Predicated region
      $region33: #{tpu_custom_call.1} parent=5 // pred_check
        %p203 = pneg %p202
      $region34: #{tpu_custom_call.1} parent=5 // pred_check_branch
        %205 = sbr.rel (%p203) target = $region36
      $region35: #{tpu_custom_call.1} parent=5 // pred_region
        // Predicated region
        $region37: #{tpu_custom_call.1} parent=35 // pred_check
          %p206 = pneg %p35
        $region38: #{tpu_custom_call.1} parent=35 // pred_check_branch
          %208 = sbr.rel (%p206) target = $region40
        $region39: #{tpu_custom_call.1} parent=35 // pred_region
          %p209 = scmp.lt.s32.totalorder %s15, 1
          %s210 = scalar_select %p209, %s15, 1
          %s211 = smul.addr %s210, 8
          %s212 = scalar_lea.vmem %s0, %s211
        $region40: #{tpu_custom_call.1} parent=35 // pred_fallthru
          _
      $region36: #{tpu_custom_call.1} parent=5 // pred_fallthru
        _
      %p213 = scmp.le.s32.totalorder 1, %s15
      %p214 = scmp.lt.s32.totalorder %s15, 3
      %p215 = pnand %p213, %p214
      %p216 = pneg %p215
      // Predicated region
      $region41: #{tpu_custom_call.1} parent=5 // pred_check
        _
      $region42: #{tpu_custom_call.1} parent=5 // pred_check_branch
        %218 = sbr.rel (%p215) target = $region44
      $region43: #{tpu_custom_call.1} parent=5 // pred_region
        %s219 = ssub.s32 %s15, 1
        %p220 = scmp.lt.s32.totalorder %s20, 1
        %s221 = scalar_select %p220, %s20, 1
        %s222 = smul.addr %s221, 8
        %s223 = scalar_lea.vmem %s0, %s222
        %p224 = pneg %p41
        %p225 = pneg %p38
        %p226 = pneg %p62
        %p227 = pneg %p59
        %p228 = pneg %p83
        %p229 = pneg %p80
        %p230 = pneg %p104
        %p231 = pneg %p101
        %p232 = pneg %p125
        %p233 = pneg %p122
        %p234 = pneg %p146
        %p235 = pneg %p143
        %p236 = pneg %p172
        %p237 = pneg %p169
        %s238 = sand.u32 %s159, 1
        %s239 = scalar_lea.sflag [#allocation3], %s238
        %s240 = sand.u32 %s159, 1
        %s241 = smul.addr %s240, 8
        %s242 = scalar_lea.vmem [#allocation2], %s241
        %p243 = scmp.lt.s32.totalorder %s20, 1
        %s244 = scalar_select %p243, %s20, 1
        %s245 = smul.addr %s244, 8
        %s246 = scalar_lea.vmem %s0, %s245
        %v247 = vld [vmem:[%s246] sm:$0xff]
        %v248 = vld [vmem:[%s5] sm:$0xff]
        %vm249 = vcmask 261120
        %v250 = vsel %vm249, %v247, 0.0
        %251 = vadd.xlane.f32.xlu0 %v250
        %v252 = vpop.xlane.xlu0 %251
        %v253 = vrcp.pop 32.0
        %v254 = vmul.f32 %v252, %v253
        %v255 = vsub.f32 %v247, %v254
        %v256 = vmul.f32 %v255, %v255
        %v257 = vsel %vm249, %v256, 0.0
        %258 = vadd.xlane.f32.xlu0 %v257
        %v259 = vpop.xlane.xlu0 %258
        %v260 = vmul.f32 %v259, %v253
        %v261 = vadd.f32 %v260, 1e-05
        %v262 = vrsqrt.pop %v261
        %v263 = vmul.f32 %v255, %v262
        %v264 = vlaneseq
        %v265 = vshrl.u32 %v264, 7
        %v266 = vsub.s32 0, %v265
        %v267 = vrot.slane %v248, %v266
        %v268 = vmul.f32 %v263, %v267
        %v269 = vlaneseq
        %v270 = vshrl.u32 %v269, 7
        %v271 = vsub.s32 1, %v270
        %v272 = vrot.slane %v248, %v271
        %v273 = vadd.f32 %v268, %v272
        %v274 = vld [vmem:[%s1] sm:$0xff]
        %v275 = vld [vmem:[%s1 + $0x8] sm:$0xff]
        %v276 = vld [vmem:[%s1 + $0x10] sm:$0xff]
        %v277 = vld [vmem:[%s1 + $0x18] sm:$0xff]
        %v278 = vlaneseq
        %v279 = vshrl.u32 %v278, 7
        %v280 = vsub.s32 2, %v279
        %v281 = vrot.slane %v248, %v280
        %v283 = vsel %vm249, %v273, 0
        %285 = vmatprep.subr.mxu0 0.0
        %286 = vmatpush1.msra.mxu0 %v274
        %287 = vmatprep.subr.mxu0 0.0
        %288 = vmatpush1.msra.mxu0 %v275
        %289 = vmatprep.subr.mxu0 0.0
        %290 = vmatpush1.msra.mxu0 %v276
        %291 = vmatprep.subr.mxu0 0.0
        %292 = vmatpush1.msra.mxu0 %v277
        %293 = vmatprep.subr.mxu0 0.0
        %294 = vmatpush1.msra.mxu0 0.0
        %295 = vmatprep.subr.mxu0 0.0
        %296 = vmatpush1.msra.mxu0 0.0
        %297 = vmatprep.subr.mxu0 0.0
        %298 = vmatpush1.msra.mxu0 0.0
        %299 = vmatprep.subr.mxu0 0.0
        %300 = vmatpush1.msra.mxu0 0.0
        %301 = vmatprep.subr.mxu0 0.0
        %302 = vmatpush1.msra.mxu0 0.0
        %303 = vmatprep.subr.mxu0 0.0
        %304 = vmatpush1.msra.mxu0 0.0
        %305 = vmatprep.subr.mxu0 0.0
        %306 = vmatpush1.msra.mxu0 0.0
        %307 = vmatprep.subr.mxu0 0.0
        %308 = vmatpush1.msra.mxu0 0.0
        %309 = vmatprep.subr.mxu0 0.0
        %310 = vmatpush1.msra.mxu0 0.0
        %311 = vmatprep.subr.mxu0 0.0
        %312 = vmatpush1.msra.mxu0 0.0
        %313 = vmatprep.subr.mxu0 0.0
        %314 = vmatpush1.msra.mxu0 0.0
        %315 = vmatprep.subr.mxu0 0.0
        %316 = vmatpush1.msra.mxu0 0.0
        %317 = vmatprep.subr.mxu0 0.0
        %318 = vmatpush1.msra.mxu0 0.0
        %319 = vmatprep.subr.mxu0 0.0
        %320 = vmatpush1.msra.mxu0 0.0
        %321 = vmatprep.subr.mxu0 0.0
        %322 = vmatpush1.msra.mxu0 0.0
        %323 = vmatprep.subr.mxu0 0.0
        %324 = vmatpush1.msra.mxu0 0.0
        %325 = vmatprep.subr.mxu0 0.0
        %326 = vmatpush1.msra.mxu0 0.0
        %327 = vmatprep.subr.mxu0 0.0
        %328 = vmatpush1.msra.mxu0 0.0
        %329 = vmatprep.subr.mxu0 0.0
        %330 = vmatpush1.msra.mxu0 0.0
        %331 = vmatprep.subr.mxu0 0.0
        %332 = vmatpush1.msra.mxu0 0.0
        %333 = vmatprep.subr.mxu0 0.0
        %334 = vmatpush1.msra.mxu0 0.0
        %335 = vmatprep.subr.mxu0 0.0
        %336 = vmatpush1.msra.mxu0 0.0
        %337 = vmatprep.subr.mxu0 0.0
        %338 = vmatpush1.msra.mxu0 0.0
        %339 = vmatprep.subr.mxu0 0.0
        %340 = vmatpush1.msra.mxu0 0.0
        %341 = vmatprep.subr.mxu0 0.0
        %342 = vmatpush1.msra.mxu0 0.0
        %343 = vmatprep.subr.mxu0 0.0
        %344 = vmatpush1.msra.mxu0 0.0
        %345 = vmatprep.subr.mxu0 0.0
        %346 = vmatpush1.msra.mxu0 0.0
        %347 = vmatprep.subr.mxu0 0.0
        %348 = vmatpush1.msra.mxu0 0.0
        %349 = vmatprep.mubr.f32.mxu0 0.0
        %350 = vmatmul.mubr.f32.gmra.mrb[0].mxu0 %v283
        %v351 = vpop.f32.mrb[0].mxu0
        %v352 = vadd.f32 %v281, %v351
        %v353 = vpop.f32.mrb[0].mxu0
        %354 = vdwg.mxu0
        %356 = vrot.lane.b32.xlu0 %v352, 96
        %v357 = vpop.permute.xlu0 %356
        %vm358 = vcmask 64512
        %v359 = vsel %vm358, %v352, 0
        %v361 = vsel %vm358, %v357, 0
        %363 = vmatprep.subr.mxu0 0.0
        %364 = vmatpush1.xpose.msra.mxu0 %v361
        %365 = vmatprep.subr.mxu0 0.0
        %366 = vmatpush1.xpose.msra.mxu0 0.0
        %367 = vmatprep.subr.mxu0 0.0
        %368 = vmatpush1.xpose.msra.mxu0 0.0
        %369 = vmatprep.subr.mxu0 0.0
        %370 = vmatpush1.xpose.msra.mxu0 0.0
        %371 = vmatprep.subr.mxu0 0.0
        %372 = vmatpush1.xpose.msra.mxu0 0.0
        %373 = vmatprep.subr.mxu0 0.0
        %374 = vmatpush1.xpose.msra.mxu0 0.0
        %375 = vmatprep.subr.mxu0 0.0
        %376 = vmatpush1.xpose.msra.mxu0 0.0
        %377 = vmatprep.subr.mxu0 0.0
        %378 = vmatpush1.xpose.msra.mxu0 0.0
        %379 = vmatprep.subr.mxu0 0.0
        %380 = vmatpush1.xpose.msra.mxu0 0.0
        %381 = vmatprep.subr.mxu0 0.0
        %382 = vmatpush1.xpose.msra.mxu0 0.0
        %383 = vmatprep.subr.mxu0 0.0
        %384 = vmatpush1.xpose.msra.mxu0 0.0
        %385 = vmatprep.subr.mxu0 0.0
        %386 = vmatpush1.xpose.msra.mxu0 0.0
        %387 = vmatprep.subr.mxu0 0.0
        %388 = vmatpush1.xpose.msra.mxu0 0.0
        %389 = vmatprep.subr.mxu0 0.0
        %390 = vmatpush1.xpose.msra.mxu0 0.0
        %391 = vmatprep.subr.mxu0 0.0
        %392 = vmatpush1.xpose.msra.mxu0 0.0
        %393 = vmatprep.subr.mxu0 0.0
        %394 = vmatpush1.xpose.msra.mxu0 0.0
        %395 = vmatprep.subr.mxu0 0.0
        %396 = vmatpush1.xpose.msra.mxu0 0.0
        %397 = vmatprep.subr.mxu0 0.0
        %398 = vmatpush1.xpose.msra.mxu0 0.0
        %399 = vmatprep.subr.mxu0 0.0
        %400 = vmatpush1.xpose.msra.mxu0 0.0
        %401 = vmatprep.subr.mxu0 0.0
        %402 = vmatpush1.xpose.msra.mxu0 0.0
        %403 = vmatprep.subr.mxu0 0.0
        %404 = vmatpush1.xpose.msra.mxu0 0.0
        %405 = vmatprep.subr.mxu0 0.0
        %406 = vmatpush1.xpose.msra.mxu0 0.0
        %407 = vmatprep.subr.mxu0 0.0
        %408 = vmatpush1.xpose.msra.mxu0 0.0
        %409 = vmatprep.subr.mxu0 0.0
        %410 = vmatpush1.xpose.msra.mxu0 0.0
        %411 = vmatprep.subr.mxu0 0.0
        %412 = vmatpush1.xpose.msra.mxu0 0.0
        %413 = vmatprep.subr.mxu0 0.0
        %414 = vmatpush1.xpose.msra.mxu0 0.0
        %415 = vmatprep.subr.mxu0 0.0
        %416 = vmatpush1.xpose.msra.mxu0 0.0
        %417 = vmatprep.subr.mxu0 0.0
        %418 = vmatpush1.xpose.msra.mxu0 0.0
        %419 = vmatprep.subr.mxu0 0.0
        %420 = vmatpush1.xpose.msra.mxu0 0.0
        %421 = vmatprep.subr.mxu0 0.0
        %422 = vmatpush1.xpose.msra.mxu0 0.0
        %423 = vmatprep.subr.mxu0 0.0
        %424 = vmatpush1.xpose.msra.mxu0 0.0
        %425 = vmatprep.subr.mxu0 0.0
        %426 = vmatpush1.xpose.msra.mxu0 0.0
        %427 = vmatprep.mubr.f32.mxu0 0.0
        %428 = vmatmul.mubr.f32.gmra.mrb[0].mxu0 %v359
        %v429 = vpop.f32.mrb[0].mxu0
        %v430 = vadd.f32 0.0, %v429
        %v431 = vpop.f32.mrb[0].mxu0
        %432 = vdwg.mxu0
        %v433 = vsel %vm358, %v430, -inf
        %434 = vmax.xlane.f32.xlu0 %v433
        %v435 = vpop.xlane.xlu0 %434
        %v436 = vsub.f32 %v430, %v435
        %v437 = vmul.f32 %v436, 1.442695
        %v438 = vpow.pop %v437
        %v439 = vsel %vm358, %v438, 0.0
        %440 = vadd.xlane.f32.xlu0 %v439
        %v441 = vpop.xlane.xlu0 %440
        %v442 = vrcp.pop %v441
        %v443 = vmul.f32 %v438, %v442
        %444 = vrot.lane.b32.xlu0 %v352, 64
        %v445 = vpop.permute.xlu0 %444
        %v448 = vsel %vm358, %v443, 0
        %450 = vmatprep.subr.mxu0 0.0
        %451 = vmatpush1.msra.mxu0 %v445
        %452 = vmatprep.subr.mxu0 0.0
        %453 = vmatpush1.msra.mxu0 0.0
        %454 = vmatprep.subr.mxu0 0.0
        %455 = vmatpush1.msra.mxu0 0.0
        %456 = vmatprep.subr.mxu0 0.0
        %457 = vmatpush1.msra.mxu0 0.0
        %458 = vmatprep.subr.mxu0 0.0
        %459 = vmatpush1.msra.mxu0 0.0
        %460 = vmatprep.subr.mxu0 0.0
        %461 = vmatpush1.msra.mxu0 0.0
        %462 = vmatprep.subr.mxu0 0.0
        %463 = vmatpush1.msra.mxu0 0.0
        %464 = vmatprep.subr.mxu0 0.0
        %465 = vmatpush1.msra.mxu0 0.0
        %466 = vmatprep.subr.mxu0 0.0
        %467 = vmatpush1.msra.mxu0 0.0
        %468 = vmatprep.subr.mxu0 0.0
        %469 = vmatpush1.msra.mxu0 0.0
        %470 = vmatprep.subr.mxu0 0.0
        %471 = vmatpush1.msra.mxu0 0.0
        %472 = vmatprep.subr.mxu0 0.0
        %473 = vmatpush1.msra.mxu0 0.0
        %474 = vmatprep.subr.mxu0 0.0
        %475 = vmatpush1.msra.mxu0 0.0
        %476 = vmatprep.subr.mxu0 0.0
        %477 = vmatpush1.msra.mxu0 0.0
        %478 = vmatprep.subr.mxu0 0.0
        %479 = vmatpush1.msra.mxu0 0.0
        %480 = vmatprep.subr.mxu0 0.0
        %481 = vmatpush1.msra.mxu0 0.0
        %482 = vmatprep.subr.mxu0 0.0
        %483 = vmatpush1.msra.mxu0 0.0
        %484 = vmatprep.subr.mxu0 0.0
        %485 = vmatpush1.msra.mxu0 0.0
        %486 = vmatprep.subr.mxu0 0.0
        %487 = vmatpush1.msra.mxu0 0.0
        %488 = vmatprep.subr.mxu0 0.0
        %489 = vmatpush1.msra.mxu0 0.0
        %490 = vmatprep.subr.mxu0 0.0
        %491 = vmatpush1.msra.mxu0 0.0
        %492 = vmatprep.subr.mxu0 0.0
        %493 = vmatpush1.msra.mxu0 0.0
        %494 = vmatprep.subr.mxu0 0.0
        %495 = vmatpush1.msra.mxu0 0.0
        %496 = vmatprep.subr.mxu0 0.0
        %497 = vmatpush1.msra.mxu0 0.0
        %498 = vmatprep.subr.mxu0 0.0
        %499 = vmatpush1.msra.mxu0 0.0
        %500 = vmatprep.subr.mxu0 0.0
        %501 = vmatpush1.msra.mxu0 0.0
        %502 = vmatprep.subr.mxu0 0.0
        %503 = vmatpush1.msra.mxu0 0.0
        %504 = vmatprep.subr.mxu0 0.0
        %505 = vmatpush1.msra.mxu0 0.0
        %506 = vmatprep.subr.mxu0 0.0
        %507 = vmatpush1.msra.mxu0 0.0
        %508 = vmatprep.subr.mxu0 0.0
        %509 = vmatpush1.msra.mxu0 0.0
        %510 = vmatprep.subr.mxu0 0.0
        %511 = vmatpush1.msra.mxu0 0.0
        %512 = vmatprep.subr.mxu0 0.0
        %513 = vmatpush1.msra.mxu0 0.0
        %514 = vmatprep.mubr.f32.mxu0 0.0
        %515 = vmatmul.mubr.f32.gmra.mrb[0].mxu0 %v448
        %v516 = vpop.f32.mrb[0].mxu0
        %v517 = vadd.f32 0.0, %v516
        %v518 = vpop.f32.mrb[0].mxu0
        %519 = vdwg.mxu0
        %520 = vrot.lane.b32.xlu0 %v352, 120
        %v521 = vpop.permute.xlu0 %520
        %522 = vrot.lane.b32.xlu0 %v352, 88
        %v523 = vpop.permute.xlu0 %522
        %v524 = vsel %vm358, %v521, 0
        %v526 = vsel %vm358, %v523, 0
        %528 = vmatprep.subr.mxu0 0.0
        %529 = vmatpush1.xpose.msra.mxu0 %v526
        %530 = vmatprep.subr.mxu0 0.0
        %531 = vmatpush1.xpose.msra.mxu0 0.0
        %532 = vmatprep.subr.mxu0 0.0
        %533 = vmatpush1.xpose.msra.mxu0 0.0
        %534 = vmatprep.subr.mxu0 0.0
        %535 = vmatpush1.xpose.msra.mxu0 0.0
        %536 = vmatprep.subr.mxu0 0.0
        %537 = vmatpush1.xpose.msra.mxu0 0.0
        %538 = vmatprep.subr.mxu0 0.0
        %539 = vmatpush1.xpose.msra.mxu0 0.0
        %540 = vmatprep.subr.mxu0 0.0
        %541 = vmatpush1.xpose.msra.mxu0 0.0
        %542 = vmatprep.subr.mxu0 0.0
        %543 = vmatpush1.xpose.msra.mxu0 0.0
        %544 = vmatprep.subr.mxu0 0.0
        %545 = vmatpush1.xpose.msra.mxu0 0.0
        %546 = vmatprep.subr.mxu0 0.0
        %547 = vmatpush1.xpose.msra.mxu0 0.0
        %548 = vmatprep.subr.mxu0 0.0
        %549 = vmatpush1.xpose.msra.mxu0 0.0
        %550 = vmatprep.subr.mxu0 0.0
        %551 = vmatpush1.xpose.msra.mxu0 0.0
        %552 = vmatprep.subr.mxu0 0.0
        %553 = vmatpush1.xpose.msra.mxu0 0.0
        %554 = vmatprep.subr.mxu0 0.0
        %555 = vmatpush1.xpose.msra.mxu0 0.0
        %556 = vmatprep.subr.mxu0 0.0
        %557 = vmatpush1.xpose.msra.mxu0 0.0
        %558 = vmatprep.subr.mxu0 0.0
        %559 = vmatpush1.xpose.msra.mxu0 0.0
        %560 = vmatprep.subr.mxu0 0.0
        %561 = vmatpush1.xpose.msra.mxu0 0.0
        %562 = vmatprep.subr.mxu0 0.0
        %563 = vmatpush1.xpose.msra.mxu0 0.0
        %564 = vmatprep.subr.mxu0 0.0
        %565 = vmatpush1.xpose.msra.mxu0 0.0
        %566 = vmatprep.subr.mxu0 0.0
        %567 = vmatpush1.xpose.msra.mxu0 0.0
        %568 = vmatprep.subr.mxu0 0.0
        %569 = vmatpush1.xpose.msra.mxu0 0.0
        %570 = vmatprep.subr.mxu0 0.0
        %571 = vmatpush1.xpose.msra.mxu0 0.0
        %572 = vmatprep.subr.mxu0 0.0
        %573 = vmatpush1.xpose.msra.mxu0 0.0
        %574 = vmatprep.subr.mxu0 0.0
        %575 = vmatpush1.xpose.msra.mxu0 0.0
        %576 = vmatprep.subr.mxu0 0.0
        %577 = vmatpush1.xpose.msra.mxu0 0.0
        %578 = vmatprep.subr.mxu0 0.0
        %579 = vmatpush1.xpose.msra.mxu0 0.0
        %580 = vmatprep.subr.mxu0 0.0
        %581 = vmatpush1.xpose.msra.mxu0 0.0
        %582 = vmatprep.subr.mxu0 0.0
        %583 = vmatpush1.xpose.msra.mxu0 0.0
        %584 = vmatprep.subr.mxu0 0.0
        %585 = vmatpush1.xpose.msra.mxu0 0.0
        %586 = vmatprep.subr.mxu0 0.0
        %587 = vmatpush1.xpose.msra.mxu0 0.0
        %588 = vmatprep.subr.mxu0 0.0
        %589 = vmatpush1.xpose.msra.mxu0 0.0
        %590 = vmatprep.subr.mxu0 0.0
        %591 = vmatpush1.xpose.msra.mxu0 0.0
        %592 = vmatprep.mubr.f32.mxu0 0.0
        %593 = vmatmul.mubr.f32.gmra.mrb[0].mxu0 %v524
        %v594 = vpop.f32.mrb[0].mxu0
        %v595 = vadd.f32 0.0, %v594
        %v596 = vpop.f32.mrb[0].mxu0
        %597 = vdwg.mxu0
        %v598 = vsel %vm358, %v595, -inf
        %599 = vmax.xlane.f32.xlu0 %v598
        %v600 = vpop.xlane.xlu0 %599
        %v601 = vsub.f32 %v595, %v600
        %v602 = vmul.f32 %v601, 1.442695
        %v603 = vpow.pop %v602
        %v604 = vsel %vm358, %v603, 0.0
        %605 = vadd.xlane.f32.xlu0 %v604
        %v606 = vpop.xlane.xlu0 %605
        %v607 = vrcp.pop %v606
        %v608 = vmul.f32 %v603, %v607
        %609 = vrot.lane.b32.xlu0 %v352, 56
        %v610 = vpop.permute.xlu0 %609
        %v613 = vsel %vm358, %v608, 0
        %615 = vmatprep.subr.mxu0 0.0
        %616 = vmatpush1.msra.mxu0 %v610
        %617 = vmatprep.subr.mxu0 0.0
        %618 = vmatpush1.msra.mxu0 0.0
        %619 = vmatprep.subr.mxu0 0.0
        %620 = vmatpush1.msra.mxu0 0.0
        %621 = vmatprep.subr.mxu0 0.0
        %622 = vmatpush1.msra.mxu0 0.0
        %623 = vmatprep.subr.mxu0 0.0
        %624 = vmatpush1.msra.mxu0 0.0
        %625 = vmatprep.subr.mxu0 0.0
        %626 = vmatpush1.msra.mxu0 0.0
        %627 = vmatprep.subr.mxu0 0.0
        %628 = vmatpush1.msra.mxu0 0.0
        %629 = vmatprep.subr.mxu0 0.0
        %630 = vmatpush1.msra.mxu0 0.0
        %631 = vmatprep.subr.mxu0 0.0
        %632 = vmatpush1.msra.mxu0 0.0
        %633 = vmatprep.subr.mxu0 0.0
        %634 = vmatpush1.msra.mxu0 0.0
        %635 = vmatprep.subr.mxu0 0.0
        %636 = vmatpush1.msra.mxu0 0.0
        %637 = vmatprep.subr.mxu0 0.0
        %638 = vmatpush1.msra.mxu0 0.0
        %639 = vmatprep.subr.mxu0 0.0
        %640 = vmatpush1.msra.mxu0 0.0
        %641 = vmatprep.subr.mxu0 0.0
        %642 = vmatpush1.msra.mxu0 0.0
        %643 = vmatprep.subr.mxu0 0.0
        %644 = vmatpush1.msra.mxu0 0.0
        %645 = vmatprep.subr.mxu0 0.0
        %646 = vmatpush1.msra.mxu0 0.0
        %647 = vmatprep.subr.mxu0 0.0
        %648 = vmatpush1.msra.mxu0 0.0
        %649 = vmatprep.subr.mxu0 0.0
        %650 = vmatpush1.msra.mxu0 0.0
        %651 = vmatprep.subr.mxu0 0.0
        %652 = vmatpush1.msra.mxu0 0.0
        %653 = vmatprep.subr.mxu0 0.0
        %654 = vmatpush1.msra.mxu0 0.0
        %655 = vmatprep.subr.mxu0 0.0
        %656 = vmatpush1.msra.mxu0 0.0
        %657 = vmatprep.subr.mxu0 0.0
        %658 = vmatpush1.msra.mxu0 0.0
        %659 = vmatprep.subr.mxu0 0.0
        %660 = vmatpush1.msra.mxu0 0.0
        %661 = vmatprep.subr.mxu0 0.0
        %662 = vmatpush1.msra.mxu0 0.0
        %663 = vmatprep.subr.mxu0 0.0
        %664 = vmatpush1.msra.mxu0 0.0
        %665 = vmatprep.subr.mxu0 0.0
        %666 = vmatpush1.msra.mxu0 0.0
        %667 = vmatprep.subr.mxu0 0.0
        %668 = vmatpush1.msra.mxu0 0.0
        %669 = vmatprep.subr.mxu0 0.0
        %670 = vmatpush1.msra.mxu0 0.0
        %671 = vmatprep.subr.mxu0 0.0
        %672 = vmatpush1.msra.mxu0 0.0
        %673 = vmatprep.subr.mxu0 0.0
        %674 = vmatpush1.msra.mxu0 0.0
        %675 = vmatprep.subr.mxu0 0.0
        %676 = vmatpush1.msra.mxu0 0.0
        %677 = vmatprep.subr.mxu0 0.0
        %678 = vmatpush1.msra.mxu0 0.0
        %679 = vmatprep.mubr.f32.mxu0 0.0
        %680 = vmatmul.mubr.f32.gmra.mrb[0].mxu0 %v613
        %v681 = vpop.f32.mrb[0].mxu0
        %v682 = vadd.f32 0.0, %v681
        %v683 = vpop.f32.mrb[0].mxu0
        %684 = vdwg.mxu0
        %685 = vrot.lane.b32.xlu0 %v352, 112
        %v686 = vpop.permute.xlu0 %685
        %687 = vrot.lane.b32.xlu0 %v352, 80
        %v688 = vpop.permute.xlu0 %687
        %v689 = vsel %vm358, %v686, 0
        %v691 = vsel %vm358, %v688, 0
        %693 = vmatprep.subr.mxu0 0.0
        %694 = vmatpush1.xpose.msra.mxu0 %v691
        %695 = vmatprep.subr.mxu0 0.0
        %696 = vmatpush1.xpose.msra.mxu0 0.0
        %697 = vmatprep.subr.mxu0 0.0
        %698 = vmatpush1.xpose.msra.mxu0 0.0
        %699 = vmatprep.subr.mxu0 0.0
        %700 = vmatpush1.xpose.msra.mxu0 0.0
        %701 = vmatprep.subr.mxu0 0.0
        %702 = vmatpush1.xpose.msra.mxu0 0.0
        %703 = vmatprep.subr.mxu0 0.0
        %704 = vmatpush1.xpose.msra.mxu0 0.0
        %705 = vmatprep.subr.mxu0 0.0
        %706 = vmatpush1.xpose.msra.mxu0 0.0
        %707 = vmatprep.subr.mxu0 0.0
        %708 = vmatpush1.xpose.msra.mxu0 0.0
        %709 = vmatprep.subr.mxu0 0.0
        %710 = vmatpush1.xpose.msra.mxu0 0.0
        %711 = vmatprep.subr.mxu0 0.0
        %712 = vmatpush1.xpose.msra.mxu0 0.0
        %713 = vmatprep.subr.mxu0 0.0
        %714 = vmatpush1.xpose.msra.mxu0 0.0
        %715 = vmatprep.subr.mxu0 0.0
        %716 = vmatpush1.xpose.msra.mxu0 0.0
        %717 = vmatprep.subr.mxu0 0.0
        %718 = vmatpush1.xpose.msra.mxu0 0.0
        %719 = vmatprep.subr.mxu0 0.0
        %720 = vmatpush1.xpose.msra.mxu0 0.0
        %721 = vmatprep.subr.mxu0 0.0
        %722 = vmatpush1.xpose.msra.mxu0 0.0
        %723 = vmatprep.subr.mxu0 0.0
        %724 = vmatpush1.xpose.msra.mxu0 0.0
        %725 = vmatprep.subr.mxu0 0.0
        %726 = vmatpush1.xpose.msra.mxu0 0.0
        %727 = vmatprep.subr.mxu0 0.0
        %728 = vmatpush1.xpose.msra.mxu0 0.0
        %729 = vmatprep.subr.mxu0 0.0
        %730 = vmatpush1.xpose.msra.mxu0 0.0
        %731 = vmatprep.subr.mxu0 0.0
        %732 = vmatpush1.xpose.msra.mxu0 0.0
        %733 = vmatprep.subr.mxu0 0.0
        %734 = vmatpush1.xpose.msra.mxu0 0.0
        %735 = vmatprep.subr.mxu0 0.0
        %736 = vmatpush1.xpose.msra.mxu0 0.0
        %737 = vmatprep.subr.mxu0 0.0
        %738 = vmatpush1.xpose.msra.mxu0 0.0
        %739 = vmatprep.subr.mxu0 0.0
        %740 = vmatpush1.xpose.msra.mxu0 0.0
        %741 = vmatprep.subr.mxu0 0.0
        %742 = vmatpush1.xpose.msra.mxu0 0.0
        %743 = vmatprep.subr.mxu0 0.0
        %744 = vmatpush1.xpose.msra.mxu0 0.0
        %745 = vmatprep.subr.mxu0 0.0
        %746 = vmatpush1.xpose.msra.mxu0 0.0
        %747 = vmatprep.subr.mxu0 0.0
        %748 = vmatpush1.xpose.msra.mxu0 0.0
        %749 = vmatprep.subr.mxu0 0.0
        %750 = vmatpush1.xpose.msra.mxu0 0.0
        %751 = vmatprep.subr.mxu0 0.0
        %752 = vmatpush1.xpose.msra.mxu0 0.0
        %753 = vmatprep.subr.mxu0 0.0
        %754 = vmatpush1.xpose.msra.mxu0 0.0
        %755 = vmatprep.subr.mxu0 0.0
        %756 = vmatpush1.xpose.msra.mxu0 0.0
        %757 = vmatprep.mubr.f32.mxu0 0.0
        %758 = vmatmul.mubr.f32.gmra.mrb[0].mxu0 %v689
        %v759 = vpop.f32.mrb[0].mxu0
        %v760 = vadd.f32 0.0, %v759
        %v761 = vpop.f32.mrb[0].mxu0
        %762 = vdwg.mxu0
        %v763 = vsel %vm358, %v760, -inf
        %764 = vmax.xlane.f32.xlu0 %v763
        %v765 = vpop.xlane.xlu0 %764
        %v766 = vsub.f32 %v760, %v765
        %v767 = vmul.f32 %v766, 1.442695
        %v768 = vpow.pop %v767
        %v769 = vsel %vm358, %v768, 0.0
        %770 = vadd.xlane.f32.xlu0 %v769
        %v771 = vpop.xlane.xlu0 %770
        %v772 = vrcp.pop %v771
        %v773 = vmul.f32 %v768, %v772
        %774 = vrot.lane.b32.xlu0 %v352, 48
        %v775 = vpop.permute.xlu0 %774
        %v778 = vsel %vm358, %v773, 0
        %780 = vmatprep.subr.mxu0 0.0
        %781 = vmatpush1.msra.mxu0 %v775
        %782 = vmatprep.subr.mxu0 0.0
        %783 = vmatpush1.msra.mxu0 0.0
        %784 = vmatprep.subr.mxu0 0.0
        %785 = vmatpush1.msra.mxu0 0.0
        %786 = vmatprep.subr.mxu0 0.0
        %787 = vmatpush1.msra.mxu0 0.0
        %788 = vmatprep.subr.mxu0 0.0
        %789 = vmatpush1.msra.mxu0 0.0
        %790 = vmatprep.subr.mxu0 0.0
        %791 = vmatpush1.msra.mxu0 0.0
        %792 = vmatprep.subr.mxu0 0.0
        %793 = vmatpush1.msra.mxu0 0.0
        %794 = vmatprep.subr.mxu0 0.0
        %795 = vmatpush1.msra.mxu0 0.0
        %796 = vmatprep.subr.mxu0 0.0
        %797 = vmatpush1.msra.mxu0 0.0
        %798 = vmatprep.subr.mxu0 0.0
        %799 = vmatpush1.msra.mxu0 0.0
        %800 = vmatprep.subr.mxu0 0.0
        %801 = vmatpush1.msra.mxu0 0.0
        %802 = vmatprep.subr.mxu0 0.0
        %803 = vmatpush1.msra.mxu0 0.0
        %804 = vmatprep.subr.mxu0 0.0
        %805 = vmatpush1.msra.mxu0 0.0
        %806 = vmatprep.subr.mxu0 0.0
        %807 = vmatpush1.msra.mxu0 0.0
        %808 = vmatprep.subr.mxu0 0.0
        %809 = vmatpush1.msra.mxu0 0.0
        %810 = vmatprep.subr.mxu0 0.0
        %811 = vmatpush1.msra.mxu0 0.0
        %812 = vmatprep.subr.mxu0 0.0
        %813 = vmatpush1.msra.mxu0 0.0
        %814 = vmatprep.subr.mxu0 0.0
        %815 = vmatpush1.msra.mxu0 0.0
        %816 = vmatprep.subr.mxu0 0.0
        %817 = vmatpush1.msra.mxu0 0.0
        %818 = vmatprep.subr.mxu0 0.0
        %819 = vmatpush1.msra.mxu0 0.0
        %820 = vmatprep.subr.mxu0 0.0
        %821 = vmatpush1.msra.mxu0 0.0
        %822 = vmatprep.subr.mxu0 0.0
        %823 = vmatpush1.msra.mxu0 0.0
        %824 = vmatprep.subr.mxu0 0.0
        %825 = vmatpush1.msra.mxu0 0.0
        %826 = vmatprep.subr.mxu0 0.0
        %827 = vmatpush1.msra.mxu0 0.0
        %828 = vmatprep.subr.mxu0 0.0
        %829 = vmatpush1.msra.mxu0 0.0
        %830 = vmatprep.subr.mxu0 0.0
        %831 = vmatpush1.msra.mxu0 0.0
        %832 = vmatprep.subr.mxu0 0.0
        %833 = vmatpush1.msra.mxu0 0.0
        %834 = vmatprep.subr.mxu0 0.0
        %835 = vmatpush1.msra.mxu0 0.0
        %836 = vmatprep.subr.mxu0 0.0
        %837 = vmatpush1.msra.mxu0 0.0
        %838 = vmatprep.subr.mxu0 0.0
        %839 = vmatpush1.msra.mxu0 0.0
        %840 = vmatprep.subr.mxu0 0.0
        %841 = vmatpush1.msra.mxu0 0.0
        %842 = vmatprep.subr.mxu0 0.0
        %843 = vmatpush1.msra.mxu0 0.0
        %844 = vmatprep.mubr.f32.mxu0 0.0
        %845 = vmatmul.mubr.f32.gmra.mrb[0].mxu0 %v778
        %v846 = vpop.f32.mrb[0].mxu0
        %v847 = vadd.f32 0.0, %v846
        %v848 = vpop.f32.mrb[0].mxu0
        %849 = vdwg.mxu0
        %850 = vrot.lane.b32.xlu0 %v352, 104
        %v851 = vpop.permute.xlu0 %850
        %852 = vrot.lane.b32.xlu0 %v352, 72
        %v853 = vpop.permute.xlu0 %852
        %v854 = vsel %vm358, %v851, 0
        %v856 = vsel %vm358, %v853, 0
        %858 = vmatprep.subr.mxu0 0.0
        %859 = vmatpush1.xpose.msra.mxu0 %v856
        %860 = vmatprep.subr.mxu0 0.0
        %861 = vmatpush1.xpose.msra.mxu0 0.0
        %862 = vmatprep.subr.mxu0 0.0
        %863 = vmatpush1.xpose.msra.mxu0 0.0
        %864 = vmatprep.subr.mxu0 0.0
        %865 = vmatpush1.xpose.msra.mxu0 0.0
        %866 = vmatprep.subr.mxu0 0.0
        %867 = vmatpush1.xpose.msra.mxu0 0.0
        %868 = vmatprep.subr.mxu0 0.0
        %869 = vmatpush1.xpose.msra.mxu0 0.0
        %870 = vmatprep.subr.mxu0 0.0
        %871 = vmatpush1.xpose.msra.mxu0 0.0
        %872 = vmatprep.subr.mxu0 0.0
        %873 = vmatpush1.xpose.msra.mxu0 0.0
        %874 = vmatprep.subr.mxu0 0.0
        %875 = vmatpush1.xpose.msra.mxu0 0.0
        %876 = vmatprep.subr.mxu0 0.0
        %877 = vmatpush1.xpose.msra.mxu0 0.0
        %878 = vmatprep.subr.mxu0 0.0
        %879 = vmatpush1.xpose.msra.mxu0 0.0
        %880 = vmatprep.subr.mxu0 0.0
        %881 = vmatpush1.xpose.msra.mxu0 0.0
        %882 = vmatprep.subr.mxu0 0.0
        %883 = vmatpush1.xpose.msra.mxu0 0.0
        %884 = vmatprep.subr.mxu0 0.0
        %885 = vmatpush1.xpose.msra.mxu0 0.0
        %886 = vmatprep.subr.mxu0 0.0
        %887 = vmatpush1.xpose.msra.mxu0 0.0
        %888 = vmatprep.subr.mxu0 0.0
        %889 = vmatpush1.xpose.msra.mxu0 0.0
        %890 = vmatprep.subr.mxu0 0.0
        %891 = vmatpush1.xpose.msra.mxu0 0.0
        %892 = vmatprep.subr.mxu0 0.0
        %893 = vmatpush1.xpose.msra.mxu0 0.0
        %894 = vmatprep.subr.mxu0 0.0
        %895 = vmatpush1.xpose.msra.mxu0 0.0
        %896 = vmatprep.subr.mxu0 0.0
        %897 = vmatpush1.xpose.msra.mxu0 0.0
        %898 = vmatprep.subr.mxu0 0.0
        %899 = vmatpush1.xpose.msra.mxu0 0.0
        %900 = vmatprep.subr.mxu0 0.0
        %901 = vmatpush1.xpose.msra.mxu0 0.0
        %902 = vmatprep.subr.mxu0 0.0
        %903 = vmatpush1.xpose.msra.mxu0 0.0
        %904 = vmatprep.subr.mxu0 0.0
        %905 = vmatpush1.xpose.msra.mxu0 0.0
        %906 = vmatprep.subr.mxu0 0.0
        %907 = vmatpush1.xpose.msra.mxu0 0.0
        %908 = vmatprep.subr.mxu0 0.0
        %909 = vmatpush1.xpose.msra.mxu0 0.0
        %910 = vmatprep.subr.mxu0 0.0
        %911 = vmatpush1.xpose.msra.mxu0 0.0
        %912 = vmatprep.subr.mxu0 0.0
        %913 = vmatpush1.xpose.msra.mxu0 0.0
        %914 = vmatprep.subr.mxu0 0.0
        %915 = vmatpush1.xpose.msra.mxu0 0.0
        %916 = vmatprep.subr.mxu0 0.0
        %917 = vmatpush1.xpose.msra.mxu0 0.0
        %918 = vmatprep.subr.mxu0 0.0
        %919 = vmatpush1.xpose.msra.mxu0 0.0
        %920 = vmatprep.subr.mxu0 0.0
        %921 = vmatpush1.xpose.msra.mxu0 0.0
        %922 = vmatprep.mubr.f32.mxu0 0.0
        %923 = vmatmul.mubr.f32.gmra.mrb[0].mxu0 %v854
        %v924 = vpop.f32.mrb[0].mxu0
        %v925 = vadd.f32 0.0, %v924
        %v926 = vpop.f32.mrb[0].mxu0
        %927 = vdwg.mxu0
        %v928 = vsel %vm358, %v925, -inf
        %929 = vmax.xlane.f32.xlu0 %v928
        %v930 = vpop.xlane.xlu0 %929
        %v931 = vsub.f32 %v925, %v930
        %v932 = vmul.f32 %v931, 1.442695
        %v933 = vpow.pop %v932
        %v934 = vsel %vm358, %v933, 0.0
        %935 = vadd.xlane.f32.xlu0 %v934
        %v936 = vpop.xlane.xlu0 %935
        %v937 = vrcp.pop %v936
        %v938 = vmul.f32 %v933, %v937
        %939 = vrot.lane.b32.xlu0 %v352, 40
        %v940 = vpop.permute.xlu0 %939
        %v943 = vsel %vm358, %v938, 0
        %945 = vmatprep.subr.mxu0 0.0
        %946 = vmatpush1.msra.mxu0 %v940
        %947 = vmatprep.subr.mxu0 0.0
        %948 = vmatpush1.msra.mxu0 0.0
        %949 = vmatprep.subr.mxu0 0.0
        %950 = vmatpush1.msra.mxu0 0.0
        %951 = vmatprep.subr.mxu0 0.0
        %952 = vmatpush1.msra.mxu0 0.0
        %953 = vmatprep.subr.mxu0 0.0
        %954 = vmatpush1.msra.mxu0 0.0
        %955 = vmatprep.subr.mxu0 0.0
        %956 = vmatpush1.msra.mxu0 0.0
        %957 = vmatprep.subr.mxu0 0.0
        %958 = vmatpush1.msra.mxu0 0.0
        %959 = vmatprep.subr.mxu0 0.0
        %960 = vmatpush1.msra.mxu0 0.0
        %961 = vmatprep.subr.mxu0 0.0
        %962 = vmatpush1.msra.mxu0 0.0
        %963 = vmatprep.subr.mxu0 0.0
        %964 = vmatpush1.msra.mxu0 0.0
        %965 = vmatprep.subr.mxu0 0.0
        %966 = vmatpush1.msra.mxu0 0.0
        %967 = vmatprep.subr.mxu0 0.0
        %968 = vmatpush1.msra.mxu0 0.0
        %969 = vmatprep.subr.mxu0 0.0
        %970 = vmatpush1.msra.mxu0 0.0
        %971 = vmatprep.subr.mxu0 0.0
        %972 = vmatpush1.msra.mxu0 0.0
        %973 = vmatprep.subr.mxu0 0.0
        %974 = vmatpush1.msra.mxu0 0.0
        %975 = vmatprep.subr.mxu0 0.0
        %976 = vmatpush1.msra.mxu0 0.0
        %977 = vmatprep.subr.mxu0 0.0
        %978 = vmatpush1.msra.mxu0 0.0
        %979 = vmatprep.subr.mxu0 0.0
        %980 = vmatpush1.msra.mxu0 0.0
        %981 = vmatprep.subr.mxu0 0.0
        %982 = vmatpush1.msra.mxu0 0.0
        %983 = vmatprep.subr.mxu0 0.0
        %984 = vmatpush1.msra.mxu0 0.0
        %985 = vmatprep.subr.mxu0 0.0
        %986 = vmatpush1.msra.mxu0 0.0
        %987 = vmatprep.subr.mxu0 0.0
        %988 = vmatpush1.msra.mxu0 0.0
        %989 = vmatprep.subr.mxu0 0.0
        %990 = vmatpush1.msra.mxu0 0.0
        %991 = vmatprep.subr.mxu0 0.0
        %992 = vmatpush1.msra.mxu0 0.0
        %993 = vmatprep.subr.mxu0 0.0
        %994 = vmatpush1.msra.mxu0 0.0
        %995 = vmatprep.subr.mxu0 0.0
        %996 = vmatpush1.msra.mxu0 0.0
        %997 = vmatprep.subr.mxu0 0.0
        %998 = vmatpush1.msra.mxu0 0.0
        %999 = vmatprep.subr.mxu0 0.0
        %1000 = vmatpush1.msra.mxu0 0.0
        %1001 = vmatprep.subr.mxu0 0.0
        %1002 = vmatpush1.msra.mxu0 0.0
        %1003 = vmatprep.subr.mxu0 0.0
        %1004 = vmatpush1.msra.mxu0 0.0
        %1005 = vmatprep.subr.mxu0 0.0
        %1006 = vmatpush1.msra.mxu0 0.0
        %1007 = vmatprep.subr.mxu0 0.0
        %1008 = vmatpush1.msra.mxu0 0.0
        %1009 = vmatprep.mubr.f32.mxu0 0.0
        %1010 = vmatmul.mubr.f32.gmra.mrb[0].mxu0 %v943
        %v1011 = vpop.f32.mrb[0].mxu0
        %v1012 = vadd.f32 0.0, %v1011
        %v1013 = vpop.f32.mrb[0].mxu0
        %1014 = vdwg.mxu0
        %1016 = vrot.lane.b32.xlu0 %v682, 8
        %v1017 = vpop.permute.xlu0 %1016
        %1020 = vrot.lane.b32.xlu0 %v847, 16
        %v1021 = vpop.permute.xlu0 %1020
        %1024 = vrot.lane.b32.xlu0 %v1012, 24
        %v1025 = vpop.permute.xlu0 %1024
        %v1027 = vsel %vm358, %v517, %v1017
        %vm1028 = vcmask 130048
        %v1029 = vsel %vm1028, %v1027, %v1021
        %vm1030 = vcmask 195584
        %v1031 = vsel %vm1030, %v1029, %v1025
        %v1032 = vld [vmem:[%s2] sm:$0xff]
        %v1033 = vld [vmem:[%s2 + $0x8] sm:$0xff]
        %v1034 = vld [vmem:[%s2 + $0x10] sm:$0xff]
        %v1035 = vld [vmem:[%s2 + $0x18] sm:$0xff]
        %v1036 = vlaneseq
        %v1037 = vshrl.u32 %v1036, 7
        %v1038 = vsub.s32 3, %v1037
        %v1039 = vrot.slane %v248, %v1038
        %v1041 = vsel %vm249, %v1031, 0
        %1043 = vmatprep.subr.mxu0 0.0
        %1044 = vmatpush1.msra.mxu0 %v1032
        %1045 = vmatprep.subr.mxu0 0.0
        %1046 = vmatpush1.msra.mxu0 %v1033
        %1047 = vmatprep.subr.mxu0 0.0
        %1048 = vmatpush1.msra.mxu0 %v1034
        %1049 = vmatprep.subr.mxu0 0.0
        %1050 = vmatpush1.msra.mxu0 %v1035
        %1051 = vmatprep.subr.mxu0 0.0
        %1052 = vmatpush1.msra.mxu0 0.0
        %1053 = vmatprep.subr.mxu0 0.0
        %1054 = vmatpush1.msra.mxu0 0.0
        %1055 = vmatprep.subr.mxu0 0.0
        %1056 = vmatpush1.msra.mxu0 0.0
        %1057 = vmatprep.subr.mxu0 0.0
        %1058 = vmatpush1.msra.mxu0 0.0
        %1059 = vmatprep.subr.mxu0 0.0
        %1060 = vmatpush1.msra.mxu0 0.0
        %1061 = vmatprep.subr.mxu0 0.0
        %1062 = vmatpush1.msra.mxu0 0.0
        %1063 = vmatprep.subr.mxu0 0.0
        %1064 = vmatpush1.msra.mxu0 0.0
        %1065 = vmatprep.subr.mxu0 0.0
        %1066 = vmatpush1.msra.mxu0 0.0
        %1067 = vmatprep.subr.mxu0 0.0
        %1068 = vmatpush1.msra.mxu0 0.0
        %1069 = vmatprep.subr.mxu0 0.0
        %1070 = vmatpush1.msra.mxu0 0.0
        %1071 = vmatprep.subr.mxu0 0.0
        %1072 = vmatpush1.msra.mxu0 0.0
        %1073 = vmatprep.subr.mxu0 0.0
        %1074 = vmatpush1.msra.mxu0 0.0
        %1075 = vmatprep.subr.mxu0 0.0
        %1076 = vmatpush1.msra.mxu0 0.0
        %1077 = vmatprep.subr.mxu0 0.0
        %1078 = vmatpush1.msra.mxu0 0.0
        %1079 = vmatprep.subr.mxu0 0.0
        %1080 = vmatpush1.msra.mxu0 0.0
        %1081 = vmatprep.subr.mxu0 0.0
        %1082 = vmatpush1.msra.mxu0 0.0
        %1083 = vmatprep.subr.mxu0 0.0
        %1084 = vmatpush1.msra.mxu0 0.0
        %1085 = vmatprep.subr.mxu0 0.0
        %1086 = vmatpush1.msra.mxu0 0.0
        %1087 = vmatprep.subr.mxu0 0.0
        %1088 = vmatpush1.msra.mxu0 0.0
        %1089 = vmatprep.subr.mxu0 0.0
        %1090 = vmatpush1.msra.mxu0 0.0
        %1091 = vmatprep.subr.mxu0 0.0
        %1092 = vmatpush1.msra.mxu0 0.0
        %1093 = vmatprep.subr.mxu0 0.0
        %1094 = vmatpush1.msra.mxu0 0.0
        %1095 = vmatprep.subr.mxu0 0.0
        %1096 = vmatpush1.msra.mxu0 0.0
        %1097 = vmatprep.subr.mxu0 0.0
        %1098 = vmatpush1.msra.mxu0 0.0
        %1099 = vmatprep.subr.mxu0 0.0
        %1100 = vmatpush1.msra.mxu0 0.0
        %1101 = vmatprep.subr.mxu0 0.0
        %1102 = vmatpush1.msra.mxu0 0.0
        %1103 = vmatprep.subr.mxu0 0.0
        %1104 = vmatpush1.msra.mxu0 0.0
        %1105 = vmatprep.subr.mxu0 0.0
        %1106 = vmatpush1.msra.mxu0 0.0
        %1107 = vmatprep.mubr.f32.mxu0 0.0
        %1108 = vmatmul.mubr.f32.gmra.mrb[0].mxu0 %v1041
        %v1109 = vpop.f32.mrb[0].mxu0
        %v1110 = vadd.f32 %v1039, %v1109
        %v1111 = vpop.f32.mrb[0].mxu0
        %1112 = vdwg.mxu0
        %v1113 = vadd.f32 %v247, %v1110
        %v1114 = vsel %vm249, %v1113, 0.0
        %1115 = vadd.xlane.f32.xlu0 %v1114
        %v1116 = vpop.xlane.xlu0 %1115
        %v1117 = vmul.f32 %v1116, %v253
        %v1118 = vsub.f32 %v1113, %v1117
        %v1119 = vmul.f32 %v1118, %v1118
        %v1120 = vsel %vm249, %v1119, 0.0
        %1121 = vadd.xlane.f32.xlu0 %v1120
        %v1122 = vpop.xlane.xlu0 %1121
        %v1123 = vmul.f32 %v1122, %v253
        %v1124 = vadd.f32 %v1123, 1e-05
        %v1125 = vrsqrt.pop %v1124
        %v1126 = vmul.f32 %v1118, %v1125
        %v1127 = vlaneseq
        %v1128 = vshrl.u32 %v1127, 7
        %v1129 = vsub.s32 4, %v1128
        %v1130 = vrot.slane %v248, %v1129
        %v1131 = vmul.f32 %v1126, %v1130
        %v1132 = vlaneseq
        %v1133 = vshrl.u32 %v1132, 7
        %v1134 = vsub.s32 5, %v1133
        %v1135 = vrot.slane %v248, %v1134
        %v1136 = vadd.f32 %v1131, %v1135
        %v1137 = vld [vmem:[%s3] sm:$0xff]
        %v1138 = vld [vmem:[%s3 + $0x8] sm:$0xff]
        %v1139 = vld [vmem:[%s3 + $0x10] sm:$0xff]
        %v1140 = vld [vmem:[%s3 + $0x18] sm:$0xff]
        %v1141 = vlaneseq
        %v1142 = vshrl.u32 %v1141, 7
        %v1143 = vsub.s32 6, %v1142
        %v1144 = vrot.slane %v248, %v1143
        %v1146 = vsel %vm249, %v1136, 0
        %1148 = vmatprep.subr.mxu0 0.0
        %1149 = vmatpush1.msra.mxu0 %v1137
        %1150 = vmatprep.subr.mxu0 0.0
        %1151 = vmatpush1.msra.mxu0 %v1138
        %1152 = vmatprep.subr.mxu0 0.0
        %1153 = vmatpush1.msra.mxu0 %v1139
        %1154 = vmatprep.subr.mxu0 0.0
        %1155 = vmatpush1.msra.mxu0 %v1140
        %1156 = vmatprep.subr.mxu0 0.0
        %1157 = vmatpush1.msra.mxu0 0.0
        %1158 = vmatprep.subr.mxu0 0.0
        %1159 = vmatpush1.msra.mxu0 0.0
        %1160 = vmatprep.subr.mxu0 0.0
        %1161 = vmatpush1.msra.mxu0 0.0
        %1162 = vmatprep.subr.mxu0 0.0
        %1163 = vmatpush1.msra.mxu0 0.0
        %1164 = vmatprep.subr.mxu0 0.0
        %1165 = vmatpush1.msra.mxu0 0.0
        %1166 = vmatprep.subr.mxu0 0.0
        %1167 = vmatpush1.msra.mxu0 0.0
        %1168 = vmatprep.subr.mxu0 0.0
        %1169 = vmatpush1.msra.mxu0 0.0
        %1170 = vmatprep.subr.mxu0 0.0
        %1171 = vmatpush1.msra.mxu0 0.0
        %1172 = vmatprep.subr.mxu0 0.0
        %1173 = vmatpush1.msra.mxu0 0.0
        %1174 = vmatprep.subr.mxu0 0.0
        %1175 = vmatpush1.msra.mxu0 0.0
        %1176 = vmatprep.subr.mxu0 0.0
        %1177 = vmatpush1.msra.mxu0 0.0
        %1178 = vmatprep.subr.mxu0 0.0
        %1179 = vmatpush1.msra.mxu0 0.0
        %1180 = vmatprep.subr.mxu0 0.0
        %1181 = vmatpush1.msra.mxu0 0.0
        %1182 = vmatprep.subr.mxu0 0.0
        %1183 = vmatpush1.msra.mxu0 0.0
        %1184 = vmatprep.subr.mxu0 0.0
        %1185 = vmatpush1.msra.mxu0 0.0
        %1186 = vmatprep.subr.mxu0 0.0
        %1187 = vmatpush1.msra.mxu0 0.0
        %1188 = vmatprep.subr.mxu0 0.0
        %1189 = vmatpush1.msra.mxu0 0.0
        %1190 = vmatprep.subr.mxu0 0.0
        %1191 = vmatpush1.msra.mxu0 0.0
        %1192 = vmatprep.subr.mxu0 0.0
        %1193 = vmatpush1.msra.mxu0 0.0
        %1194 = vmatprep.subr.mxu0 0.0
        %1195 = vmatpush1.msra.mxu0 0.0
        %1196 = vmatprep.subr.mxu0 0.0
        %1197 = vmatpush1.msra.mxu0 0.0
        %1198 = vmatprep.subr.mxu0 0.0
        %1199 = vmatpush1.msra.mxu0 0.0
        %1200 = vmatprep.subr.mxu0 0.0
        %1201 = vmatpush1.msra.mxu0 0.0
        %1202 = vmatprep.subr.mxu0 0.0
        %1203 = vmatpush1.msra.mxu0 0.0
        %1204 = vmatprep.subr.mxu0 0.0
        %1205 = vmatpush1.msra.mxu0 0.0
        %1206 = vmatprep.subr.mxu0 0.0
        %1207 = vmatpush1.msra.mxu0 0.0
        %1208 = vmatprep.subr.mxu0 0.0
        %1209 = vmatpush1.msra.mxu0 0.0
        %1210 = vmatprep.subr.mxu0 0.0
        %1211 = vmatpush1.msra.mxu0 0.0
        %1212 = vmatprep.mubr.f32.mxu0 0.0
        %1213 = vmatmul.mubr.f32.gmra.mrb[0].mxu0 %v1146
        %v1214 = vpop.f32.mrb[0].mxu0
        %v1215 = vadd.f32 %v1144, %v1214
        %v1216 = vpop.f32.mrb[0].mxu0
        %1217 = vdwg.mxu0
        %v1218 = vmul.f32 %v1215, 0.5
        %v1219 = vmul.f32 %v1215, 0.70710677
        %v1220 = verf.f32.pop %v1219
        %v1221 = vadd.f32 %v1220, 1.0
        %v1222 = vmul.f32 %v1218, %v1221
        %v1223 = vld [vmem:[%s4] sm:$0xff]
        %v1224 = vld [vmem:[%s4 + $0x8] sm:$0xff]
        %v1225 = vld [vmem:[%s4 + $0x10] sm:$0xff]
        %v1226 = vld [vmem:[%s4 + $0x18] sm:$0xff]
        %v1227 = vld [vmem:[%s4 + $0x20] sm:$0xff]
        %v1228 = vld [vmem:[%s4 + $0x28] sm:$0xff]
        %v1229 = vld [vmem:[%s4 + $0x30] sm:$0xff]
        %v1230 = vld [vmem:[%s4 + $0x38] sm:$0xff]
        %v1231 = vld [vmem:[%s4 + $0x40] sm:$0xff]
        %v1232 = vld [vmem:[%s4 + $0x48] sm:$0xff]
        %v1233 = vld [vmem:[%s4 + $0x50] sm:$0xff]
        %v1234 = vld [vmem:[%s4 + $0x58] sm:$0xff]
        %v1235 = vld [vmem:[%s4 + $0x60] sm:$0xff]
        %v1236 = vld [vmem:[%s4 + $0x68] sm:$0xff]
        %v1237 = vld [vmem:[%s4 + $0x70] sm:$0xff]
        %v1238 = vld [vmem:[%s4 + $0x78] sm:$0xff]
        %v1239 = vlaneseq
        %v1240 = vshrl.u32 %v1239, 7
        %v1241 = vsub.s32 7, %v1240
        %v1242 = vrot.slane %v248, %v1241
        %1243 = vmatprep.subr.mxu0 0.0
        %1244 = vmatpush1.msra.mxu0 %v1223
        %1245 = vmatprep.subr.mxu0 0.0
        %1246 = vmatpush1.msra.mxu0 %v1224
        %1247 = vmatprep.subr.mxu0 0.0
        %1248 = vmatpush1.msra.mxu0 %v1225
        %1249 = vmatprep.subr.mxu0 0.0
        %1250 = vmatpush1.msra.mxu0 %v1226
        %1251 = vmatprep.subr.mxu0 0.0
        %1252 = vmatpush1.msra.mxu0 %v1227
        %1253 = vmatprep.subr.mxu0 0.0
        %1254 = vmatpush1.msra.mxu0 %v1228
        %1255 = vmatprep.subr.mxu0 0.0
        %1256 = vmatpush1.msra.mxu0 %v1229
        %1257 = vmatprep.subr.mxu0 0.0
        %1258 = vmatpush1.msra.mxu0 %v1230
        %1259 = vmatprep.subr.mxu0 0.0
        %1260 = vmatpush1.msra.mxu0 %v1231
        %1261 = vmatprep.subr.mxu0 0.0
        %1262 = vmatpush1.msra.mxu0 %v1232
        %1263 = vmatprep.subr.mxu0 0.0
        %1264 = vmatpush1.msra.mxu0 %v1233
        %1265 = vmatprep.subr.mxu0 0.0
        %1266 = vmatpush1.msra.mxu0 %v1234
        %1267 = vmatprep.subr.mxu0 0.0
        %1268 = vmatpush1.msra.mxu0 %v1235
        %1269 = vmatprep.subr.mxu0 0.0
        %1270 = vmatpush1.msra.mxu0 %v1236
        %1271 = vmatprep.subr.mxu0 0.0
        %1272 = vmatpush1.msra.mxu0 %v1237
        %1273 = vmatprep.subr.mxu0 0.0
        %1274 = vmatpush1.msra.mxu0 %v1238
        %1275 = vmatprep.subr.mxu0 0.0
        %1276 = vmatpush1.msra.mxu0 0.0
        %1277 = vmatprep.subr.mxu0 0.0
        %1278 = vmatpush1.msra.mxu0 0.0
        %1279 = vmatprep.subr.mxu0 0.0
        %1280 = vmatpush1.msra.mxu0 0.0
        %1281 = vmatprep.subr.mxu0 0.0
        %1282 = vmatpush1.msra.mxu0 0.0
        %1283 = vmatprep.subr.mxu0 0.0
        %1284 = vmatpush1.msra.mxu0 0.0
        %1285 = vmatprep.subr.mxu0 0.0
        %1286 = vmatpush1.msra.mxu0 0.0
        %1287 = vmatprep.subr.mxu0 0.0
        %1288 = vmatpush1.msra.mxu0 0.0
        %1289 = vmatprep.subr.mxu0 0.0
        %1290 = vmatpush1.msra.mxu0 0.0
        %1291 = vmatprep.subr.mxu0 0.0
        %1292 = vmatpush1.msra.mxu0 0.0
        %1293 = vmatprep.subr.mxu0 0.0
        %1294 = vmatpush1.msra.mxu0 0.0
        %1295 = vmatprep.subr.mxu0 0.0
        %1296 = vmatpush1.msra.mxu0 0.0
        %1297 = vmatprep.subr.mxu0 0.0
        %1298 = vmatpush1.msra.mxu0 0.0
        %1299 = vmatprep.subr.mxu0 0.0
        %1300 = vmatpush1.msra.mxu0 0.0
        %1301 = vmatprep.subr.mxu0 0.0
        %1302 = vmatpush1.msra.mxu0 0.0
        %1303 = vmatprep.subr.mxu0 0.0
        %1304 = vmatpush1.msra.mxu0 0.0
        %1305 = vmatprep.subr.mxu0 0.0
        %1306 = vmatpush1.msra.mxu0 0.0
        %1307 = vmatprep.mubr.f32.mxu0 0.0
        %1308 = vmatmul.mubr.f32.gmra.mrb[0].mxu0 %v1222
        %v1309 = vpop.f32.mrb[0].mxu0
        %v1310 = vadd.f32 %v1242, %v1309
        %v1311 = vpop.f32.mrb[0].mxu0
        %1312 = vdwg.mxu0
        %v1313 = vadd.f32 %v1113, %v1310
        %1314 = vst.msk [vmem:[%s242] sm:$0xff] %vm249, %v1313
        %s1315 = sand.u32 %s159, 1
        %s1316 = scalar_lea.sflag [#allocation3], %s1315
        %s1317 = sand.u32 %s159, 1
        %s1318 = smul.addr %s1317, 8
        %s1319 = scalar_lea.vmem [#allocation2], %s1318
        // Predicated region
        $region45: #{tpu_custom_call.1} parent=43 // pred_check
          %p1320 = pneg %p169
        $region46: #{tpu_custom_call.1} parent=43 // pred_check_branch
          %1322 = sbr.rel (%p1320) target = $region48
        $region47: #{tpu_custom_call.1} parent=43 // pred_region
          %s1324 = ssub.s32 128, 128
          %1325 = vsyncadd %s1316, %s1324
          %s1326 = smul.addr %s20, 128
          %s1327 = scalar_lea.hbm %s6, %s1326
          %s1329 = sshll.u32 %s1319, 4
          %s1330 = int_to_ptr.vmem [resolvable:$true] %s1329
          %1332 = dma.vmem_to_hbm [thread:$0]  %s1330, 128, %s1327, %s1316
        $region48: #{tpu_custom_call.1} parent=43 // pred_fallthru
          _
      $region44: #{tpu_custom_call.1} parent=5 // pred_fallthru
        _
      %p1333 = scmp.le.s32.totalorder 2, %s15
      // Predicated region
      $region49: #{tpu_custom_call.1} parent=5 // pred_check
        %p1334 = pneg %p1333
      $region50: #{tpu_custom_call.1} parent=5 // pred_check_branch
        %1336 = sbr.rel (%p1334) target = $region52
      $region51: #{tpu_custom_call.1} parent=5 // pred_region
        %s1337 = ssub.s32 %s15, 2
        // Predicated region
        $region53: #{tpu_custom_call.1} parent=51 // pred_check
          %p1338 = pneg %p175
        $region54: #{tpu_custom_call.1} parent=51 // pred_check_branch
          %1340 = sbr.rel (%p1338) target = $region56
        $region55: #{tpu_custom_call.1} parent=51 // pred_region
          %s1341 = sand.u32 %s160, 1
          %s1342 = scalar_lea.sflag [#allocation3], %s1341
          %s1343 = sand.u32 %s160, 1
          %s1344 = smul.addr %s1343, 8
          %s1345 = scalar_lea.vmem [#allocation2], %s1344
          %1346 = dma.done %s1342, 128
        $region56: #{tpu_custom_call.1} parent=51 // pred_fallthru
          _
      $region52: #{tpu_custom_call.1} parent=5 // pred_fallthru
        _
    $region6: #{tpu_custom_call.1} parent=1 // loop_footer
      %s19 = sadd.s32 1, %s15
    $region7: #{tpu_custom_call.1} parent=1 // loop_footer_branch
      %14 = sbr.rel target = $region3
    $region8: #{tpu_custom_call.1} parent=1 // loop_exit
      _
    %1347 = vsyncpa [#allocation3], 1
    %s1348 = scalar_lea.sflag [#allocation3], 1
    %1349 = vsyncpa %s1348, 1

</llo_original>
